<compile_context>
chip_gen: v7x
topology: tpu7x:2x2x1
jax: 0.10.0
libtpu: 0.0.40
codegen_flags: <defaults>
</compile_context>

<pallas_src>
import functools
import math

import jax
import jax.numpy as jnp
from jax.experimental import pallas as pl
from jax.experimental.pallas import tpu as pltpu


def _tpu_info():
    """Best-effort (vmem_capacity_bytes, tensorcores_per_chip). Never raises."""
    vmem_bytes = 128 * 1024 * 1024
    num_cores = 1
    try:
        info = pltpu.get_tpu_info()
        vmem_bytes = int(getattr(info, "vmem_capacity_bytes", vmem_bytes))
        found = False
        for attr in ("num_cores", "core_count", "num_tensorcores",
                     "tensorcore_count", "cores_per_chip", "num_cores_per_chip"):
            v = getattr(info, attr, None)
            if v:
                num_cores = int(v)
                found = True
                break
        if not found:
            cv = getattr(info, "chip_version", None)
            if cv is not None and "7" in str(cv):
                num_cores = 2
    except Exception:
        pass
    if num_cores >= 2:
        # Dual-TC parts (v7x) have 64 MiB per TensorCore; stay conservative
        # even if the query reported a chip-level figure.
        vmem_bytes = min(vmem_bytes, 64 * 1024 * 1024)
    return vmem_bytes, num_cores


def _compute(vproj, scores, expand_ref, wf_ref, bf_ref, out_ref, *,
             block_batch, seq_len, approx_reciprocal):
    """Shared tail: softmax over S, per-head pooling, final linear."""
    TB, S = block_batch, seq_len
    H, D = expand_ref.shape

    # Softmax over the sequence axis per (batch, head), in f32 (v5e VPU/EUP
    # have no bf16). Dropout on attention weights is identity in eval mode.
    s3 = scores.reshape(TB, S, H)
    m = jnp.max(s3, axis=1, keepdims=True)            # (TB, 1, H)
    e = jnp.exp(s3 - m)                                # (TB, S, H)
    denom = jnp.sum(e, axis=1)                         # (TB, H)
    inv = pl.reciprocal(denom, approx=approx_reciprocal)
    # Normalize BEFORE expansion (cheap H-lane broadcast) so the only extra
    # MXU work is the single bf16 one-hot expansion matmul.
    attn = (e * inv[:, None, :]).astype(jnp.bfloat16).reshape(TB * S, H)
    attn_exp = jnp.dot(attn, expand_ref[...],
                       preferred_element_type=jnp.float32)          # (TB*S, D)
    ctx = jnp.sum((attn_exp * vproj).reshape(TB, S, D), axis=1)     # (TB, D)

    # Final linear (W_final rows pre-permuted host-side for torch's unshape).
    out = jnp.dot(ctx.astype(wf_ref.dtype), wf_ref[...],
                  preferred_element_type=jnp.float32) + bf_ref[...]
    out_ref[...] = out.astype(out_ref.dtype)


def _pool_kernel_shared(x_ref, wcat_ref, bcat_ref, expand_ref, wf_ref, bf_ref,
                        out_ref, *, block_batch, seq_len, model_dim,
                        approx_reciprocal):
    D = model_dim
    # Fused value-projection + per-head scores in one MXU pass (key is value).
    proj = jnp.dot(x_ref[...], wcat_ref[...],
                   preferred_element_type=jnp.float32) + bcat_ref[...]
    _compute(proj[:, :D], proj[:, D:], expand_ref, wf_ref, bf_ref, out_ref,
             block_batch=block_batch, seq_len=seq_len,
             approx_reciprocal=approx_reciprocal)


def _pool_kernel_kv(key_ref, val_ref, wv_ref, bv_ref, wk_ref, bk_ref,
                    expand_ref, wf_ref, bf_ref, out_ref, *, block_batch,
                    seq_len, model_dim, approx_reciprocal):
    del model_dim
    vproj = jnp.dot(val_ref[...], wv_ref[...],
                    preferred_element_type=jnp.float32) + bv_ref[...]
    scores = jnp.dot(key_ref[...], wk_ref[...],
                     preferred_element_type=jnp.float32) + bk_ref[...]
    _compute(vproj, scores, expand_ref, wf_ref, bf_ref, out_ref,
             block_batch=block_batch, seq_len=seq_len,
             approx_reciprocal=approx_reciprocal)


def multi_headed_pooling(key, value, params, *, head_count, block_batch=None,
                         approx_reciprocal=True):
    """key, value: (B, S, D) float32. Returns (B, model_dim_out) float32.

    approx_reciprocal=False gives an fp32-accurate softmax denominator at the
    cost of a vector divide instead of the EUP approximate reciprocal.
    """
    B, S, D = key.shape
    assert D % head_count == 0, "model_dim must be divisible by head_count!"
    dph = D // head_count
    H = head_count
    wk, bk, wv, bv, wf, bf = params   # (D,H),(H,),(D,D),(D,),(D,Dout),(Dout,)
    Dout = wf.shape[1]
    shared_kv = key is value          # fast path for the common pooling(x, x)
    n_act = 1 if shared_kv else 2

    # ---- generation-aware tiling -------------------------------------------
    vmem_cap, num_cores = _tpu_info()
    vmem_budget = max(int(0.70 * vmem_cap), 16 * 2 ** 20)

    # Bytes per unit of batch-tile TB: double-buffered bf16 activation blocks,
    # f32 intermediates (projection + expansion + pooled product), f32 output.
    per_tb = (n_act * 2 * S * D * 2
              + S * (3 * D + (D + H)) * 4
              + 2 * Dout * 4)
    weight_bytes = (D * (D + H) + H * D + D * Dout) * 2 * 2 + (D + H + Dout) * 4 * 2
    fixed = weight_bytes + (2 << 20)   # slack for compiler-internal scratch

    if block_batch is None:
        TB = max(1, (vmem_budget - fixed) // max(per_tb, 1))
        TB = int(min(TB, B))
        # Only dual-TensorCore parts benefit from forcing >= 2 grid programs,
        # and only if each program still gets a full MXU M dimension.
        if num_cores >= 2 and B > 1:
            half = pl.cdiv(B, 2)
            if half * S >= 256:
                TB = min(TB, half)
    else:
        TB = max(1, min(int(block_batch), B))

    # Sublane alignment for multi-program tilings: TB % 8 keeps both the
    # (TB*S, D) activation block and the (TB, Dout) output block 8-row aligned.
    if TB < B:
        if TB >= 8:
            TB = (TB // 8) * 8
        else:
            align = 8 // math.gcd(S, 8)
            if align > 1:
                TB = max(align, (TB // align) * align)
    nb = pl.cdiv(B, TB)
    Bp = nb * TB

    # ---- host-side weight / input prep -------------------------------------
    # torch `unshape` flattens pooled context as index d*H + h (dim-major);
    # fold that permutation into the final-linear rows (kernel is head-major).
    p = jnp.arange(D)
    perm = (p % dph) * H + (p // dph)
    wf_perm = wf[perm].astype(jnp.bfloat16)                           # (D, Dout)
    bf2 = bf.reshape(1, Dout).astype(jnp.float32)
    # One-hot head -> lane expansion matrix, exact in bf16.
    expand = (jnp.arange(H)[:, None] == (jnp.arange(D) // dph)[None, :]
              ).astype(jnp.bfloat16)                                  # (H, D)

    def _flatten(x):
        xb = x.astype(jnp.bfloat16).reshape(B * S, D)
        if Bp != B:
            xb = jnp.pad(xb, ((0, (Bp - B) * S), (0, 0)))
        return xb

    key_flat = _flatten(key)
    act_spec = pl.BlockSpec((TB * S, D), lambda b: (b, 0))

    if shared_kv:
        wcat = jnp.concatenate([wv, wk], axis=1).astype(jnp.bfloat16)  # (D, D+H)
        bcat = jnp.concatenate([bv, bk]).reshape(1, D + H).astype(jnp.float32)
        inputs = (key_flat, wcat, bcat, expand, wf_perm, bf2)
        act_specs = [act_spec]
        w_shapes = [(D, D + H), (1, D + H), (H, D), (D, Dout), (1, Dout)]
        kernel_fn = _pool_kernel_shared
    else:
        assert value.shape == key.shape
        val_flat = _flatten(value)
        inputs = (key_flat, val_flat,
                  wv.astype(jnp.bfloat16), bv.reshape(1, D).astype(jnp.float32),
                  wk.astype(jnp.bfloat16), bk.reshape(1, H).astype(jnp.float32),
                  expand, wf_perm, bf2)
        act_specs = [act_spec, act_spec]
        w_shapes = [(D, D), (1, D), (D, H), (1, H), (H, D), (D, Dout), (1, Dout)]
        kernel_fn = _pool_kernel_kv

    kernel = functools.partial(kernel_fn, block_batch=TB, seq_len=S,
                               model_dim=D, approx_reciprocal=approx_reciprocal)

    flops = int(2 * Bp * S * D * (D + H)      # projections
                + 2 * Bp * S * H * D          # one-hot head expansion
                + 2 * Bp * S * D              # pooling multiply-accumulate
                + 2 * Bp * D * Dout)          # final linear
    transcendentals = int(Bp * S * H + Bp * H)
    bytes_accessed = int(n_act * Bp * S * D * 2
                         + (D * (D + H) + H * D + D * Dout) * 2
                         + (D + H + Dout) * 4
                         + Bp * Dout * 4)
    cost = pl.CostEstimate(flops=flops, transcendentals=transcendentals,
                           bytes_accessed=bytes_accessed)

    def _call(buffered_weights):
        def w_spec(shape):
            idx = lambda b: (0, 0)
            if buffered_weights:
                # Weights are revisited every step; single-buffer them to hand
                # VMEM back to the activation tiles (matters on 64 MiB v7x).
                return pl.BlockSpec(shape, idx, pipeline_mode=pl.Buffered(1))
            return pl.BlockSpec(shape, idx)

        return pl.pallas_call(
            kernel,
            out_shape=jax.ShapeDtypeStruct((Bp, Dout), jnp.float32),
            grid=(nb,),
            in_specs=act_specs + [w_spec(s) for s in w_shapes],
            out_specs=pl.BlockSpec((TB, Dout), lambda b: (b, 0)),
            compiler_params=pltpu.CompilerParams(
                dimension_semantics=("parallel",),
                vmem_limit_bytes=int(vmem_budget)),
            cost_estimate=cost,
        )(*inputs)

    try:
        out = _call(True)
    except Exception:
        # Older jax builds may reject pipeline_mode=pl.Buffered(1); fall back.
        out = _call(False)
    return out[:B]


def reference_jax(key, value, params, *, head_count):
    """Pure-JAX mirror of the PyTorch forward (default config, mask=None)."""
    B, S, D = key.shape
    dph = D // head_count
    wk, bk, wv, bv, wf, bf = params
    scores = key @ wk + bk                                   # (B, S, H)
    vproj = value @ wv + bv                                  # (B, S, D)
    scores = jnp.transpose(scores, (0, 2, 1))                # (B, H, S)
    vals = jnp.transpose(vproj.reshape(B, S, head_count, dph), (0, 2, 1, 3))
    attn = jax.nn.softmax(scores, axis=-1)                   # softmax over S
    ctx = jnp.sum(attn[..., None] * vals, axis=-2)           # (B, H, dph)
    ctx_flat = jnp.transpose(ctx, (0, 2, 1)).reshape(B, D)   # d*H + h flatten
    return ctx_flat @ wf + bf


if __name__ == "__main__":
    B, S, D, H = 5, 8, 32, 4
    Dout = D  # model_dim_out defaults to model_dim
    rng = jax.random.PRNGKey(0)
    ks = jax.random.split(rng, 8)

    key_in = jax.random.normal(ks[0], (B, S, D), jnp.float32)
    val_in = jax.random.normal(ks[1], (B, S, D), jnp.float32)

    scale = 1.0 / jnp.sqrt(jnp.float32(D))
    wk = jax.random.normal(ks[2], (D, H), jnp.float32) * scale      # linear_keys
    bk = jax.random.normal(ks[3], (H,), jnp.float32) * 0.1
    wv = jax.random.normal(ks[4], (D, D), jnp.float32) * scale      # linear_values
    bv = jax.random.normal(ks[5], (D,), jnp.float32) * 0.1
    wf = jax.random.normal(ks[6], (D, Dout), jnp.float32) * scale   # final_linear
    bf = jax.random.normal(ks[7], (Dout,), jnp.float32) * 0.1
    params = (wk, bk, wv, bv, wf, bf)

    # bf16 matmul operands + approx reciprocal -> loose tolerance vs f32 ref.
    tol = dict(atol=5e-2, rtol=5e-2)

    # Distinct key / value (general path: two in-kernel projection matmuls).
    out_kv = jax.block_until_ready(
        multi_headed_pooling(key_in, val_in, params, head_count=H))
    ref_kv = reference_jax(key_in, val_in, params, head_count=H)
    assert out_kv.shape == (B, Dout)
    assert jnp.allclose(out_kv, ref_kv, **tol), "mismatch vs reference (key!=value)"

    # Shared key == value (common usage: fused single projection matmul).
    out_sh = jax.block_until_ready(
        multi_headed_pooling(key_in, key_in, params, head_count=H))
    ref_sh = reference_jax(key_in, key_in, params, head_count=H)
    assert out_sh.shape == (B, Dout)
    assert jnp.allclose(out_sh, ref_sh, **tol), "mismatch vs reference (shared kv)"

    # TODO(synk): bilinear-keys, query_token_ix gather, mask=masked_fill and
    # layer-norm branches are disabled by the default ctor args and are not
    # implemented here; dropout is eval-mode identity.
    print("KERNEL_OK")
</pallas_src>

<mosaic_0001>
module attributes {stable_mosaic.version = 11 : i64} {
  func.func @_pool_kernel_kv(%arg0: i32, %arg1: memref<40x32xbf16, #tpu.memory_space<vmem>>, %arg2: memref<40x32xbf16, #tpu.memory_space<vmem>>, %arg3: memref<32x32xbf16, #tpu.memory_space<vmem>>, %arg4: memref<1x32xf32, #tpu.memory_space<vmem>>, %arg5: memref<32x4xbf16, #tpu.memory_space<vmem>>, %arg6: memref<1x4xf32, #tpu.memory_space<vmem>>, %arg7: memref<4x32xbf16, #tpu.memory_space<vmem>>, %arg8: memref<32x32xbf16, #tpu.memory_space<vmem>>, %arg9: memref<1x32xf32, #tpu.memory_space<vmem>>, %arg10: memref<5x32xf32, #tpu.memory_space<vmem>>) attributes {dimension_semantics = [#tpu.dimension_semantics<parallel>], iteration_bounds = array<i64: 1>, scalar_prefetch = 0 : i64, scratch_operands = 0 : i64, tpu.core_type = #tpu.core_type<tc>, window_params = [{transform_indices = @transform_0, window_bounds = array<i64: 40, 32>}, {transform_indices = @transform_1, window_bounds = array<i64: 40, 32>}, {pipeline_mode = #tpu.pipeline_mode<synchronous>, transform_indices = @transform_2, window_bounds = array<i64: 32, 32>}, {pipeline_mode = #tpu.pipeline_mode<synchronous>, transform_indices = @transform_3, window_bounds = array<i64: 1, 32>}, {pipeline_mode = #tpu.pipeline_mode<synchronous>, transform_indices = @transform_4, window_bounds = array<i64: 32, 4>}, {pipeline_mode = #tpu.pipeline_mode<synchronous>, transform_indices = @transform_5, window_bounds = array<i64: 1, 4>}, {pipeline_mode = #tpu.pipeline_mode<synchronous>, transform_indices = @transform_6, window_bounds = array<i64: 4, 32>}, {pipeline_mode = #tpu.pipeline_mode<synchronous>, transform_indices = @transform_7, window_bounds = array<i64: 32, 32>}, {pipeline_mode = #tpu.pipeline_mode<synchronous>, transform_indices = @transform_8, window_bounds = array<i64: 1, 32>}, {transform_indices = @transform_9, window_bounds = array<i64: 5, 32>}]} {
    %c0 = arith.constant 0 : index
    %c0_0 = arith.constant 0 : index
    %0 = vector.load %arg2[%c0, %c0_0] : memref<40x32xbf16, #tpu.memory_space<vmem>>, vector<40x32xbf16>
    %c0_1 = arith.constant 0 : index
    %c0_2 = arith.constant 0 : index
    %1 = vector.load %arg3[%c0_1, %c0_2] : memref<32x32xbf16, #tpu.memory_space<vmem>>, vector<32x32xbf16>
    %cst = arith.constant dense<0.000000e+00> : vector<40x32xf32>
    %2 = tpu.matmul %0, %1, %cst {dimension_numbers = #tpu.dot_dimension_numbers<[1], [0], [0], [1], [0, 0, 1, 1], [], []>} : vector<40x32xbf16>, vector<32x32xbf16>, vector<40x32xf32> -> vector<40x32xf32>
    %c0_3 = arith.constant 0 : index
    %c0_4 = arith.constant 0 : index
    %3 = vector.load %arg4[%c0_3, %c0_4] : memref<1x32xf32, #tpu.memory_space<vmem>>, vector<1x32xf32>
    %4 = vector.broadcast %3 : vector<1x32xf32> to vector<40x32xf32>
    %5 = arith.addf %2, %4 : vector<40x32xf32>
    %c0_5 = arith.constant 0 : index
    %c0_6 = arith.constant 0 : index
    %6 = vector.load %arg1[%c0_5, %c0_6] : memref<40x32xbf16, #tpu.memory_space<vmem>>, vector<40x32xbf16>
    %c0_7 = arith.constant 0 : index
    %c0_8 = arith.constant 0 : index
    %7 = vector.load %arg5[%c0_7, %c0_8] : memref<32x4xbf16, #tpu.memory_space<vmem>>, vector<32x4xbf16>
    %cst_9 = arith.constant dense<0.000000e+00> : vector<40x4xf32>
    %8 = tpu.matmul %6, %7, %cst_9 {dimension_numbers = #tpu.dot_dimension_numbers<[1], [0], [0], [1], [0, 0, 1, 1], [], []>} : vector<40x32xbf16>, vector<32x4xbf16>, vector<40x4xf32> -> vector<40x4xf32>
    %c0_10 = arith.constant 0 : index
    %c0_11 = arith.constant 0 : index
    %9 = vector.load %arg6[%c0_10, %c0_11] : memref<1x4xf32, #tpu.memory_space<vmem>>, vector<1x4xf32>
    %10 = vector.broadcast %9 : vector<1x4xf32> to vector<40x4xf32>
    %11 = arith.addf %8, %10 : vector<40x4xf32>
    %12 = vector.shape_cast %11 : vector<40x4xf32> to vector<5x8x4xf32>
    %cst_12 = arith.constant dense<0xFF800000> : vector<5x4xf32>
    %13 = vector.multi_reduction <maximumf>, %12, %cst_12 [1] : vector<5x8x4xf32> to vector<5x4xf32>
    %14 = vector.shape_cast %13 : vector<5x4xf32> to vector<5x1x4xf32>
    %15 = vector.broadcast %14 : vector<5x1x4xf32> to vector<5x8x4xf32>
    %16 = arith.subf %12, %15 : vector<5x8x4xf32>
    %17 = math.exp %16 : vector<5x8x4xf32>
    %cst_13 = arith.constant dense<0.000000e+00> : vector<5x4xf32>
    %18 = vector.multi_reduction <add>, %17, %cst_13 [1] : vector<5x8x4xf32> to vector<5x4xf32>
    %19 = tpu.reciprocal %18 {approx = true} : vector<5x4xf32> -> vector<5x4xf32>
    %20 = vector.shape_cast %19 : vector<5x4xf32> to vector<5x1x4xf32>
    %21 = vector.broadcast %20 : vector<5x1x4xf32> to vector<5x8x4xf32>
    %22 = arith.mulf %17, %21 : vector<5x8x4xf32>
    %23 = arith.truncf %22 : vector<5x8x4xf32> to vector<5x8x4xbf16>
    %24 = vector.shape_cast %23 : vector<5x8x4xbf16> to vector<40x4xbf16>
    %c0_14 = arith.constant 0 : index
    %c0_15 = arith.constant 0 : index
    %25 = vector.load %arg7[%c0_14, %c0_15] : memref<4x32xbf16, #tpu.memory_space<vmem>>, vector<4x32xbf16>
    %cst_16 = arith.constant dense<0.000000e+00> : vector<40x32xf32>
    %26 = tpu.matmul %24, %25, %cst_16 {dimension_numbers = #tpu.dot_dimension_numbers<[1], [0], [0], [1], [0, 0, 1, 1], [], []>} : vector<40x4xbf16>, vector<4x32xbf16>, vector<40x32xf32> -> vector<40x32xf32>
    %27 = arith.mulf %26, %5 : vector<40x32xf32>
    %28 = vector.shape_cast %27 : vector<40x32xf32> to vector<5x8x32xf32>
    %cst_17 = arith.constant dense<0.000000e+00> : vector<5x32xf32>
    %29 = vector.multi_reduction <add>, %28, %cst_17 [1] : vector<5x8x32xf32> to vector<5x32xf32>
    %30 = arith.truncf %29 : vector<5x32xf32> to vector<5x32xbf16>
    %c0_18 = arith.constant 0 : index
    %c0_19 = arith.constant 0 : index
    %31 = vector.load %arg8[%c0_18, %c0_19] : memref<32x32xbf16, #tpu.memory_space<vmem>>, vector<32x32xbf16>
    %cst_20 = arith.constant dense<0.000000e+00> : vector<5x32xf32>
    %32 = tpu.matmul %30, %31, %cst_20 {dimension_numbers = #tpu.dot_dimension_numbers<[1], [0], [0], [1], [0, 0, 1, 1], [], []>} : vector<5x32xbf16>, vector<32x32xbf16>, vector<5x32xf32> -> vector<5x32xf32>
    %c0_21 = arith.constant 0 : index
    %c0_22 = arith.constant 0 : index
    %33 = vector.load %arg9[%c0_21, %c0_22] : memref<1x32xf32, #tpu.memory_space<vmem>>, vector<1x32xf32>
    %34 = vector.broadcast %33 : vector<1x32xf32> to vector<5x32xf32>
    %35 = arith.addf %32, %34 : vector<5x32xf32>
    %c0_23 = arith.constant 0 : index
    %c0_24 = arith.constant 0 : index
    %36 = vector.load %arg10[%c0_23, %c0_24] : memref<5x32xf32, #tpu.memory_space<vmem>>, vector<5x32xf32>
    tpu.vector_store %arg10[%c0_23, %c0_24], %35 {strides = array<i32>} : memref<5x32xf32, #tpu.memory_space<vmem>>, vector<5x32xf32>,
    return
  }
  func.func @transform_0(%arg0: i32) -> (i32, i32) {
    %c0_i32 = arith.constant 0 : i32
    %c0_i32_0 = arith.constant 0 : i32
    return %arg0, %c0_i32 : i32, i32
  }
  func.func @transform_1(%arg0: i32) -> (i32, i32) {
    %c0_i32 = arith.constant 0 : i32
    %c0_i32_0 = arith.constant 0 : i32
    return %arg0, %c0_i32 : i32, i32
  }
  func.func @transform_2(%arg0: i32) -> (i32, i32) {
    %c0_i32 = arith.constant 0 : i32
    %c0_i32_0 = arith.constant 0 : i32
    %c0_i32_1 = arith.constant 0 : i32
    return %c0_i32, %c0_i32_0 : i32, i32
  }
  func.func @transform_3(%arg0: i32) -> (i32, i32) {
    %c0_i32 = arith.constant 0 : i32
    %c0_i32_0 = arith.constant 0 : i32
    %c0_i32_1 = arith.constant 0 : i32
    return %c0_i32, %c0_i32_0 : i32, i32
  }
  func.func @transform_4(%arg0: i32) -> (i32, i32) {
    %c0_i32 = arith.constant 0 : i32
    %c0_i32_0 = arith.constant 0 : i32
    %c0_i32_1 = arith.constant 0 : i32
    return %c0_i32, %c0_i32_0 : i32, i32
  }
  func.func @transform_5(%arg0: i32) -> (i32, i32) {
    %c0_i32 = arith.constant 0 : i32
    %c0_i32_0 = arith.constant 0 : i32
    %c0_i32_1 = arith.constant 0 : i32
    return %c0_i32, %c0_i32_0 : i32, i32
  }
  func.func @transform_6(%arg0: i32) -> (i32, i32) {
    %c0_i32 = arith.constant 0 : i32
    %c0_i32_0 = arith.constant 0 : i32
    %c0_i32_1 = arith.constant 0 : i32
    return %c0_i32, %c0_i32_0 : i32, i32
  }
  func.func @transform_7(%arg0: i32) -> (i32, i32) {
    %c0_i32 = arith.constant 0 : i32
    %c0_i32_0 = arith.constant 0 : i32
    %c0_i32_1 = arith.constant 0 : i32
    return %c0_i32, %c0_i32_0 : i32, i32
  }
  func.func @transform_8(%arg0: i32) -> (i32, i32) {
    %c0_i32 = arith.constant 0 : i32
    %c0_i32_0 = arith.constant 0 : i32
    %c0_i32_1 = arith.constant 0 : i32
    return %c0_i32, %c0_i32_0 : i32, i32
  }
  func.func @transform_9(%arg0: i32) -> (i32, i32) {
    %c0_i32 = arith.constant 0 : i32
    %c0_i32_0 = arith.constant 0 : i32
    return %arg0, %c0_i32 : i32, i32
  }
}

module attributes {stable_mosaic.version = 11 : i64} {
  func.func @_pool_kernel_kv(%arg0: i32, %arg1: memref<40x32xbf16, #tpu.memory_space<vmem>>, %arg2: memref<40x32xbf16, #tpu.memory_space<vmem>>, %arg3: memref<32x32xbf16, #tpu.memory_space<vmem>>, %arg4: memref<1x32xf32, #tpu.memory_space<vmem>>, %arg5: memref<32x4xbf16, #tpu.memory_space<vmem>>, %arg6: memref<1x4xf32, #tpu.memory_space<vmem>>, %arg7: memref<4x32xbf16, #tpu.memory_space<vmem>>, %arg8: memref<32x32xbf16, #tpu.memory_space<vmem>>, %arg9: memref<1x32xf32, #tpu.memory_space<vmem>>, %arg10: memref<5x32xf32, #tpu.memory_space<vmem>>) attributes {dimension_semantics = [#tpu.dimension_semantics<parallel>], iteration_bounds = array<i64: 1>, scalar_prefetch = 0 : i64, scratch_operands = 0 : i64, tpu.core_type = #tpu.core_type<tc>, window_params = [{transform_indices = @transform_0, window_bounds = array<i64: 40, 32>}, {transform_indices = @transform_1, window_bounds = array<i64: 40, 32>}, {pipeline_mode = #tpu.pipeline_mode<synchronous>, transform_indices = @transform_2, window_bounds = array<i64: 32, 32>}, {pipeline_mode = #tpu.pipeline_mode<synchronous>, transform_indices = @transform_3, window_bounds = array<i64: 1, 32>}, {pipeline_mode = #tpu.pipeline_mode<synchronous>, transform_indices = @transform_4, window_bounds = array<i64: 32, 4>}, {pipeline_mode = #tpu.pipeline_mode<synchronous>, transform_indices = @transform_5, window_bounds = array<i64: 1, 4>}, {pipeline_mode = #tpu.pipeline_mode<synchronous>, transform_indices = @transform_6, window_bounds = array<i64: 4, 32>}, {pipeline_mode = #tpu.pipeline_mode<synchronous>, transform_indices = @transform_7, window_bounds = array<i64: 32, 32>}, {pipeline_mode = #tpu.pipeline_mode<synchronous>, transform_indices = @transform_8, window_bounds = array<i64: 1, 32>}, {transform_indices = @transform_9, window_bounds = array<i64: 5, 32>}]} {
    %c0 = arith.constant 0 : index
    %c0_0 = arith.constant 0 : index
    %0 = vector.load %arg2[%c0, %c0_0] : memref<40x32xbf16, #tpu.memory_space<vmem>>, vector<40x32xbf16>
    %c0_1 = arith.constant 0 : index
    %c0_2 = arith.constant 0 : index
    %1 = vector.load %arg3[%c0_1, %c0_2] : memref<32x32xbf16, #tpu.memory_space<vmem>>, vector<32x32xbf16>
    %cst = arith.constant dense<0.000000e+00> : vector<40x32xf32>
    %2 = tpu.matmul %0, %1, %cst {dimension_numbers = #tpu.dot_dimension_numbers<[1], [0], [0], [1], [0, 0, 1, 1], [], []>} : vector<40x32xbf16>, vector<32x32xbf16>, vector<40x32xf32> -> vector<40x32xf32>
    %c0_3 = arith.constant 0 : index
    %c0_4 = arith.constant 0 : index
    %3 = vector.load %arg4[%c0_3, %c0_4] : memref<1x32xf32, #tpu.memory_space<vmem>>, vector<1x32xf32>
    %4 = vector.broadcast %3 : vector<1x32xf32> to vector<40x32xf32>
    %5 = arith.addf %2, %4 : vector<40x32xf32>
    %c0_5 = arith.constant 0 : index
    %c0_6 = arith.constant 0 : index
    %6 = vector.load %arg1[%c0_5, %c0_6] : memref<40x32xbf16, #tpu.memory_space<vmem>>, vector<40x32xbf16>
    %c0_7 = arith.constant 0 : index
    %c0_8 = arith.constant 0 : index
    %7 = vector.load %arg5[%c0_7, %c0_8] : memref<32x4xbf16, #tpu.memory_space<vmem>>, vector<32x4xbf16>
    %cst_9 = arith.constant dense<0.000000e+00> : vector<40x4xf32>
    %8 = tpu.matmul %6, %7, %cst_9 {dimension_numbers = #tpu.dot_dimension_numbers<[1], [0], [0], [1], [0, 0, 1, 1], [], []>} : vector<40x32xbf16>, vector<32x4xbf16>, vector<40x4xf32> -> vector<40x4xf32>
    %c0_10 = arith.constant 0 : index
    %c0_11 = arith.constant 0 : index
    %9 = vector.load %arg6[%c0_10, %c0_11] : memref<1x4xf32, #tpu.memory_space<vmem>>, vector<1x4xf32>
    %10 = vector.broadcast %9 : vector<1x4xf32> to vector<40x4xf32>
    %11 = arith.addf %8, %10 : vector<40x4xf32>
    %12 = vector.shape_cast %11 : vector<40x4xf32> to vector<5x8x4xf32>
    %cst_12 = arith.constant dense<0xFF800000> : vector<5x4xf32>
    %13 = vector.multi_reduction <maximumf>, %12, %cst_12 [1] : vector<5x8x4xf32> to vector<5x4xf32>
    %14 = vector.shape_cast %13 : vector<5x4xf32> to vector<5x1x4xf32>
    %15 = vector.broadcast %14 : vector<5x1x4xf32> to vector<5x8x4xf32>
    %16 = arith.subf %12, %15 : vector<5x8x4xf32>
    %17 = math.exp %16 : vector<5x8x4xf32>
    %cst_13 = arith.constant dense<0.000000e+00> : vector<5x4xf32>
    %18 = vector.multi_reduction <add>, %17, %cst_13 [1] : vector<5x8x4xf32> to vector<5x4xf32>
    %19 = tpu.reciprocal %18 {approx = true} : vector<5x4xf32> -> vector<5x4xf32>
    %20 = vector.shape_cast %19 : vector<5x4xf32> to vector<5x1x4xf32>
    %21 = vector.broadcast %20 : vector<5x1x4xf32> to vector<5x8x4xf32>
    %22 = arith.mulf %17, %21 : vector<5x8x4xf32>
    %23 = arith.truncf %22 : vector<5x8x4xf32> to vector<5x8x4xbf16>
    %24 = vector.shape_cast %23 : vector<5x8x4xbf16> to vector<40x4xbf16>
    %c0_14 = arith.constant 0 : index
    %c0_15 = arith.constant 0 : index
    %25 = vector.load %arg7[%c0_14, %c0_15] : memref<4x32xbf16, #tpu.memory_space<vmem>>, vector<4x32xbf16>
    %cst_16 = arith.constant dense<0.000000e+00> : vector<40x32xf32>
    %26 = tpu.matmul %24, %25, %cst_16 {dimension_numbers = #tpu.dot_dimension_numbers<[1], [0], [0], [1], [0, 0, 1, 1], [], []>} : vector<40x4xbf16>, vector<4x32xbf16>, vector<40x32xf32> -> vector<40x32xf32>
    %27 = arith.mulf %26, %5 : vector<40x32xf32>
    %28 = vector.shape_cast %27 : vector<40x32xf32> to vector<5x8x32xf32>
    %cst_17 = arith.constant dense<0.000000e+00> : vector<5x32xf32>
    %29 = vector.multi_reduction <add>, %28, %cst_17 [1] : vector<5x8x32xf32> to vector<5x32xf32>
    %30 = arith.truncf %29 : vector<5x32xf32> to vector<5x32xbf16>
    %c0_18 = arith.constant 0 : index
    %c0_19 = arith.constant 0 : index
    %31 = vector.load %arg8[%c0_18, %c0_19] : memref<32x32xbf16, #tpu.memory_space<vmem>>, vector<32x32xbf16>
    %cst_20 = arith.constant dense<0.000000e+00> : vector<5x32xf32>
    %32 = tpu.matmul %30, %31, %cst_20 {dimension_numbers = #tpu.dot_dimension_numbers<[1], [0], [0], [1], [0, 0, 1, 1], [], []>} : vector<5x32xbf16>, vector<32x32xbf16>, vector<5x32xf32> -> vector<5x32xf32>
    %c0_21 = arith.constant 0 : index
    %c0_22 = arith.constant 0 : index
    %33 = vector.load %arg9[%c0_21, %c0_22] : memref<1x32xf32, #tpu.memory_space<vmem>>, vector<1x32xf32>
    %34 = vector.broadcast %33 : vector<1x32xf32> to vector<5x32xf32>
    %35 = arith.addf %32, %34 : vector<5x32xf32>
    %c0_23 = arith.constant 0 : index
    %c0_24 = arith.constant 0 : index
    %36 = vector.load %arg10[%c0_23, %c0_24] : memref<5x32xf32, #tpu.memory_space<vmem>>, vector<5x32xf32>
    tpu.vector_store %arg10[%c0_23, %c0_24], %35 {strides = array<i32>} : memref<5x32xf32, #tpu.memory_space<vmem>>, vector<5x32xf32>,
    return
  }
  func.func @transform_0(%arg0: i32) -> (i32, i32) {
    %c0_i32 = arith.constant 0 : i32
    %c0_i32_0 = arith.constant 0 : i32
    return %arg0, %c0_i32 : i32, i32
  }
  func.func @transform_1(%arg0: i32) -> (i32, i32) {
    %c0_i32 = arith.constant 0 : i32
    %c0_i32_0 = arith.constant 0 : i32
    return %arg0, %c0_i32 : i32, i32
  }
  func.func @transform_2(%arg0: i32) -> (i32, i32) {
    %c0_i32 = arith.constant 0 : i32
    %c0_i32_0 = arith.constant 0 : i32
    %c0_i32_1 = arith.constant 0 : i32
    return %c0_i32, %c0_i32_0 : i32, i32
  }
  func.func @transform_3(%arg0: i32) -> (i32, i32) {
    %c0_i32 = arith.constant 0 : i32
    %c0_i32_0 = arith.constant 0 : i32
    %c0_i32_1 = arith.constant 0 : i32
    return %c0_i32, %c0_i32_0 : i32, i32
  }
  func.func @transform_4(%arg0: i32) -> (i32, i32) {
    %c0_i32 = arith.constant 0 : i32
    %c0_i32_0 = arith.constant 0 : i32
    %c0_i32_1 = arith.constant 0 : i32
    return %c0_i32, %c0_i32_0 : i32, i32
  }
  func.func @transform_5(%arg0: i32) -> (i32, i32) {
    %c0_i32 = arith.constant 0 : i32
    %c0_i32_0 = arith.constant 0 : i32
    %c0_i32_1 = arith.constant 0 : i32
    return %c0_i32, %c0_i32_0 : i32, i32
  }
  func.func @transform_6(%arg0: i32) -> (i32, i32) {
    %c0_i32 = arith.constant 0 : i32
    %c0_i32_0 = arith.constant 0 : i32
    %c0_i32_1 = arith.constant 0 : i32
    return %c0_i32, %c0_i32_0 : i32, i32
  }
  func.func @transform_7(%arg0: i32) -> (i32, i32) {
    %c0_i32 = arith.constant 0 : i32
    %c0_i32_0 = arith.constant 0 : i32
    %c0_i32_1 = arith.constant 0 : i32
    return %c0_i32, %c0_i32_0 : i32, i32
  }
  func.func @transform_8(%arg0: i32) -> (i32, i32) {
    %c0_i32 = arith.constant 0 : i32
    %c0_i32_0 = arith.constant 0 : i32
    %c0_i32_1 = arith.constant 0 : i32
    return %c0_i32, %c0_i32_0 : i32, i32
  }
  func.func @transform_9(%arg0: i32) -> (i32, i32) {
    %c0_i32 = arith.constant 0 : i32
    %c0_i32_0 = arith.constant 0 : i32
    return %arg0, %c0_i32 : i32, i32
  }
}

</mosaic_0001>

<llo_original>
// kernel: tpu_custom_call.1
$region0: #{tpu_custom_call.1}
  #allocation0 [shape = 'u32[]', space=smem, size = 0x4, offset = 0x4, fixed_abs, tag = 'smem constant byte address 0x4 - core index']
  #allocation1 [shape = 'u32[144,128]{1,0:T(1,128)}', space=vmem, size = 0x12000, scoped, tag = 'internal scratch']
  %s0 = inlined_call_operand.hbm [shape: bf16[40,32], index: 0, kind: input, shape index: {}]
  %s1 = inlined_call_operand.hbm [shape: bf16[40,32], index: 1, kind: input, shape index: {}]
  %s2 = inlined_call_operand.hbm [shape: bf16[32,32], index: 2, kind: input, shape index: {}]
  %s3 = inlined_call_operand.hbm [shape: f32[1,32], index: 3, kind: input, shape index: {}]
  %s4 = inlined_call_operand.hbm [shape: bf16[32,4], index: 4, kind: input, shape index: {}]
  %s5 = inlined_call_operand.hbm [shape: f32[1,4], index: 5, kind: input, shape index: {}]
  %s6 = inlined_call_operand.hbm [shape: bf16[4,32], index: 6, kind: input, shape index: {}]
  %s7 = inlined_call_operand.hbm [shape: bf16[32,32], index: 7, kind: input, shape index: {}]
  %s8 = inlined_call_operand.hbm [shape: f32[1,32], index: 8, kind: input, shape index: {}]
  %s9 = inlined_call_operand.hbm [shape: f32[5,32], index: 9, kind: output, shape index: {}]
  %s10 = sld [smem:[#allocation0]]
  $region82: #{tpu_custom_call.1} parent=0
    _
  %s12 = ssub.s32 1, %s10
  %s13 = scalar_select 0, %s12, %s10
  $region1: #{tpu_custom_call.1} parent=0
    #allocation2 [shape = 'u8[10240]{0}', space=vmem, size = 0x2800, scoped, tag = 'input window, operand 0, single buffered']
    #allocation3 [shape = 's32[1]{0}', space=sflag, size = 0x4, scoped, tag = 'scoped memory for tpu_custom_call.1']
    #allocation4 [shape = 's32[1]{0}', space=sflag, size = 0x4, scoped, tag = 'scoped memory for tpu_custom_call.1']
    #allocation5 [shape = 'u8[10240]{0}', space=vmem, size = 0x2800, scoped, tag = 'input window, operand 1, single buffered']
    #allocation6 [shape = 's32[1]{0}', space=sflag, size = 0x4, scoped, tag = 'scoped memory for tpu_custom_call.1']
    #allocation7 [shape = 'u8[8192]{0}', space=vmem, size = 0x2000, scoped, tag = 'input window, operand 2, single buffered']
    #allocation8 [shape = 'u8[512]{0}', space=vmem, size = 0x400, scoped, tag = 'input window, operand 3, single buffered']
    #allocation9 [shape = 's32[1]{0}', space=sflag, size = 0x4, scoped, tag = 'scoped memory for tpu_custom_call.1']
    #allocation10 [shape = 'u8[8192]{0}', space=vmem, size = 0x2000, scoped, tag = 'input window, operand 4, single buffered']
    #allocation11 [shape = 'u8[512]{0}', space=vmem, size = 0x400, scoped, tag = 'input window, operand 5, single buffered']
    #allocation12 [shape = 's32[1]{0}', space=sflag, size = 0x4, scoped, tag = 'scoped memory for tpu_custom_call.1']
    #allocation13 [shape = 'u8[1024]{0}', space=vmem, size = 0x400, scoped, tag = 'input window, operand 6, single buffered']
    #allocation14 [shape = 'u8[8192]{0}', space=vmem, size = 0x2000, scoped, tag = 'input window, operand 7, single buffered']
    #allocation15 [shape = 's32[1]{0}', space=sflag, size = 0x4, scoped, tag = 'scoped memory for tpu_custom_call.1']
    #allocation16 [shape = 'u8[512]{0}', space=vmem, size = 0x400, scoped, tag = 'input window, operand 8, single buffered']
    #allocation17 [shape = 'u8[4096]{0}', space=vmem, size = 0x1000, scoped, tag = 'output window, operand 0, single buffered']
    %14 = vsyncpa [#allocation3], 0
    %15 = vsyncpa [#allocation6], 0
    %16 = vsyncpa [#allocation9], 0
    %17 = vsyncpa [#allocation12], 0
    %18 = vsyncpa [#allocation15], 0
    %19 = vsyncpa [#allocation4], 0
    // Predicated region
    $region2: #{tpu_custom_call.1} parent=1 // pred_check
      _
    $region3: #{tpu_custom_call.1} parent=1 // pred_check_branch
      %21 = sbr.rel (0) target = $region5
    $region4: #{tpu_custom_call.1} parent=1 // pred_region
      %s23 = ssub.s32 320, 320
      %24 = vsyncadd [#allocation3], %s23
      %s25 = sshll.u32 [#allocation2], 4
      %s26 = int_to_ptr.vmem [resolvable:$true] %s25
      %31 = dma.hbm_to_vmem [thread:$0]  %s0, 320, %s26, [#allocation3], 64, 64, 4
    $region5: #{tpu_custom_call.1} parent=1 // pred_fallthru
      _
    // Predicated region
    $region6: #{tpu_custom_call.1} parent=1 // pred_check
      _
    $region7: #{tpu_custom_call.1} parent=1 // pred_check_branch
      %33 = sbr.rel (0) target = $region9
    $region8: #{tpu_custom_call.1} parent=1 // pred_region
      %s35 = ssub.s32 320, 320
      %36 = vsyncadd [#allocation6], %s35
      %s37 = sshll.u32 [#allocation5], 4
      %s38 = int_to_ptr.vmem [resolvable:$true] %s37
      %43 = dma.hbm_to_vmem [thread:$0]  %s1, 320, %s38, [#allocation6], 64, 64, 4
    $region9: #{tpu_custom_call.1} parent=1 // pred_fallthru
      _
    // Predicated region
    $region10: #{tpu_custom_call.1} parent=1 // pred_check
      _
    $region11: #{tpu_custom_call.1} parent=1 // pred_check_branch
      %45 = sbr.rel (0) target = $region13
    $region12: #{tpu_custom_call.1} parent=1 // pred_region
      %s47 = ssub.s32 256, 256
      %48 = vsyncadd [#allocation6], %s47
      %s49 = sshll.u32 [#allocation7], 4
      %s50 = int_to_ptr.vmem [resolvable:$true] %s49
      %55 = dma.hbm_to_vmem [thread:$0]  %s2, 256, %s50, [#allocation6], 64, 64, 4
    $region13: #{tpu_custom_call.1} parent=1 // pred_fallthru
      _
    // Predicated region
    $region14: #{tpu_custom_call.1} parent=1 // pred_check
      _
    $region15: #{tpu_custom_call.1} parent=1 // pred_check_branch
      %57 = sbr.rel (0) target = $region17
    $region16: #{tpu_custom_call.1} parent=1 // pred_region
      %s59 = ssub.s32 16, 16
      %60 = vsyncadd [#allocation9], %s59
      %s62 = sshll.u32 [#allocation8], 4
      %s63 = int_to_ptr.vmem [resolvable:$true] %s62
      %65 = dma.hbm_to_vmem [thread:$0]  %s3, 16, %s63, [#allocation9]
    $region17: #{tpu_custom_call.1} parent=1 // pred_fallthru
      _
    // Predicated region
    $region18: #{tpu_custom_call.1} parent=1 // pred_check
      _
    $region19: #{tpu_custom_call.1} parent=1 // pred_check_branch
      %67 = sbr.rel (0) target = $region21
    $region20: #{tpu_custom_call.1} parent=1 // pred_region
      %s69 = ssub.s32 256, 256
      %70 = vsyncadd [#allocation9], %s69
      %s71 = sshll.u32 [#allocation10], 4
      %s72 = int_to_ptr.vmem [resolvable:$true] %s71
      %77 = dma.hbm_to_vmem [thread:$0]  %s4, 256, %s72, [#allocation9], 64, 64, 4
    $region21: #{tpu_custom_call.1} parent=1 // pred_fallthru
      _
    // Predicated region
    $region22: #{tpu_custom_call.1} parent=1 // pred_check
      _
    $region23: #{tpu_custom_call.1} parent=1 // pred_check_branch
      %79 = sbr.rel (0) target = $region25
    $region24: #{tpu_custom_call.1} parent=1 // pred_region
      %s81 = ssub.s32 16, 16
      %82 = vsyncadd [#allocation12], %s81
      %s84 = sshll.u32 [#allocation11], 4
      %s85 = int_to_ptr.vmem [resolvable:$true] %s84
      %87 = dma.hbm_to_vmem [thread:$0]  %s5, 16, %s85, [#allocation12]
    $region25: #{tpu_custom_call.1} parent=1 // pred_fallthru
      _
    // Predicated region
    $region26: #{tpu_custom_call.1} parent=1 // pred_check
      _
    $region27: #{tpu_custom_call.1} parent=1 // pred_check_branch
      %89 = sbr.rel (0) target = $region29
    $region28: #{tpu_custom_call.1} parent=1 // pred_region
      %s91 = ssub.s32 32, 32
      %92 = vsyncadd [#allocation12], %s91
      %s94 = sshll.u32 [#allocation13], 4
      %s95 = int_to_ptr.vmem [resolvable:$true] %s94
      %97 = dma.hbm_to_vmem [thread:$0]  %s6, 32, %s95, [#allocation12]
    $region29: #{tpu_custom_call.1} parent=1 // pred_fallthru
      _
    // Predicated region
    $region30: #{tpu_custom_call.1} parent=1 // pred_check
      _
    $region31: #{tpu_custom_call.1} parent=1 // pred_check_branch
      %99 = sbr.rel (0) target = $region33
    $region32: #{tpu_custom_call.1} parent=1 // pred_region
      %s101 = ssub.s32 256, 256
      %102 = vsyncadd [#allocation15], %s101
      %s103 = sshll.u32 [#allocation14], 4
      %s104 = int_to_ptr.vmem [resolvable:$true] %s103
      %109 = dma.hbm_to_vmem [thread:$0]  %s7, 256, %s104, [#allocation15], 64, 64, 4
    $region33: #{tpu_custom_call.1} parent=1 // pred_fallthru
      _
    // Predicated region
    $region34: #{tpu_custom_call.1} parent=1 // pred_check
      _
    $region35: #{tpu_custom_call.1} parent=1 // pred_check_branch
      %111 = sbr.rel (0) target = $region37
    $region36: #{tpu_custom_call.1} parent=1 // pred_region
      %s113 = ssub.s32 16, 16
      %114 = vsyncadd [#allocation15], %s113
      %s116 = sshll.u32 [#allocation16], 4
      %s117 = int_to_ptr.vmem [resolvable:$true] %s116
      %119 = dma.hbm_to_vmem [thread:$0]  %s8, 16, %s117, [#allocation15]
    $region37: #{tpu_custom_call.1} parent=1 // pred_fallthru
      _
    // Predicated region
    $region38: #{tpu_custom_call.1} parent=1 // pred_check
      _
    $region39: #{tpu_custom_call.1} parent=1 // pred_check_branch
      %121 = sbr.rel (0) target = $region41
    $region40: #{tpu_custom_call.1} parent=1 // pred_region
      %122 = dma.done [#allocation3], 320
    $region41: #{tpu_custom_call.1} parent=1 // pred_fallthru
      _
    // Predicated region
    $region42: #{tpu_custom_call.1} parent=1 // pred_check
      _
    $region43: #{tpu_custom_call.1} parent=1 // pred_check_branch
      %124 = sbr.rel (0) target = $region45
    $region44: #{tpu_custom_call.1} parent=1 // pred_region
      %125 = dma.done [#allocation6], 320
    $region45: #{tpu_custom_call.1} parent=1 // pred_fallthru
      _
    // Predicated region
    $region46: #{tpu_custom_call.1} parent=1 // pred_check
      _
    $region47: #{tpu_custom_call.1} parent=1 // pred_check_branch
      %127 = sbr.rel (0) target = $region49
    $region48: #{tpu_custom_call.1} parent=1 // pred_region
      %128 = dma.done [#allocation6], 256
    $region49: #{tpu_custom_call.1} parent=1 // pred_fallthru
      _
    // Predicated region
    $region50: #{tpu_custom_call.1} parent=1 // pred_check
      _
    $region51: #{tpu_custom_call.1} parent=1 // pred_check_branch
      %130 = sbr.rel (0) target = $region53
    $region52: #{tpu_custom_call.1} parent=1 // pred_region
      %131 = dma.done [#allocation9], 16
    $region53: #{tpu_custom_call.1} parent=1 // pred_fallthru
      _
    // Predicated region
    $region54: #{tpu_custom_call.1} parent=1 // pred_check
      _
    $region55: #{tpu_custom_call.1} parent=1 // pred_check_branch
      %133 = sbr.rel (0) target = $region57
    $region56: #{tpu_custom_call.1} parent=1 // pred_region
      %134 = dma.done [#allocation9], 256
    $region57: #{tpu_custom_call.1} parent=1 // pred_fallthru
      _
    // Predicated region
    $region58: #{tpu_custom_call.1} parent=1 // pred_check
      _
    $region59: #{tpu_custom_call.1} parent=1 // pred_check_branch
      %136 = sbr.rel (0) target = $region61
    $region60: #{tpu_custom_call.1} parent=1 // pred_region
      %137 = dma.done [#allocation12], 16
    $region61: #{tpu_custom_call.1} parent=1 // pred_fallthru
      _
    // Predicated region
    $region62: #{tpu_custom_call.1} parent=1 // pred_check
      _
    $region63: #{tpu_custom_call.1} parent=1 // pred_check_branch
      %139 = sbr.rel (0) target = $region65
    $region64: #{tpu_custom_call.1} parent=1 // pred_region
      %140 = dma.done [#allocation12], 32
    $region65: #{tpu_custom_call.1} parent=1 // pred_fallthru
      _
    // Predicated region
    $region66: #{tpu_custom_call.1} parent=1 // pred_check
      _
    $region67: #{tpu_custom_call.1} parent=1 // pred_check_branch
      %142 = sbr.rel (0) target = $region69
    $region68: #{tpu_custom_call.1} parent=1 // pred_region
      %143 = dma.done [#allocation15], 256
    $region69: #{tpu_custom_call.1} parent=1 // pred_fallthru
      _
    // Predicated region
    $region70: #{tpu_custom_call.1} parent=1 // pred_check
      _
    $region71: #{tpu_custom_call.1} parent=1 // pred_check_branch
      %145 = sbr.rel (0) target = $region73
    $region72: #{tpu_custom_call.1} parent=1 // pred_region
      %146 = dma.done [#allocation15], 16
    $region73: #{tpu_custom_call.1} parent=1 // pred_fallthru
      _
    %v148 = vld [vmem:[#allocation5] sm:$0xf]
    %v149 = vld [vmem:[#allocation5 + $0x4] sm:$0xf]
    %v150 = vld [vmem:[#allocation5 + $0x8] sm:$0xf]
    %v151 = vld [vmem:[#allocation5 + $0xc] sm:$0xf]
    %v152 = vld [vmem:[#allocation5 + $0x10] sm:$0xf]
    %v153 = vld [vmem:[#allocation7] sm:$0xf]
    %v154 = vld [vmem:[#allocation7 + $0x4] sm:$0xf]
    %v155 = vld [vmem:[#allocation7 + $0x8] sm:$0xf]
    %v156 = vld [vmem:[#allocation7 + $0xc] sm:$0xf]
    %v157 = vld [vmem:[#allocation8] sm:$0x1]
    %v159 = vlaneseq
    %v160 = vshrl.u32 %v159, 7
    %v161 = vsub.s32 0, %v160
    %v162 = vrot.slane %v157, %v161
    %v169 = vunpack.c.l.b16 %v148
    %v170 = vunpack.c.l.b16 %v149
    %v171 = vunpack.c.l.b16 %v150
    %v172 = vunpack.c.l.b16 %v151
    %v173 = vunpack.c.l.b16 %v152
    %v174 = vpack.c.b16 %v170, %v169
    %v175 = vpack.c.b16 %v172, %v171
    %v176 = vpack.c.b16 %v173, %v173
    %v181 = vunpack.c.l.b16 %v153
    %v182 = vunpack.c.l.b16 %v154
    %v183 = vunpack.c.l.b16 %v155
    %v184 = vunpack.c.l.b16 %v156
    %v185 = vpack.c.b16 %v182, %v181
    %v186 = vpack.c.b16 %v184, %v183
    %vm189 = vcmask 261120
    %v191 = vsel %vm189, %v174, 0
    %v194 = vsel %vm189, %v175, 0
    %v197 = vsel %vm189, %v176, 0
    %199 = vmatprep.subr.bf16.mxu0 0
    %200 = vmatpush1.bf16.msra.mxu0 %v185
    %201 = vmatprep.subr.bf16.mxu0 0
    %202 = vmatpush1.bf16.msra.mxu0 %v186
    %203 = vmatprep.subr.bf16.mxu0 0
    %204 = vmatpush1.bf16.msra.mxu0 0
    %205 = vmatprep.subr.bf16.mxu0 0
    %206 = vmatpush1.bf16.msra.mxu0 0
    %207 = vmatprep.subr.bf16.mxu0 0
    %208 = vmatpush1.bf16.msra.mxu0 0
    %209 = vmatprep.subr.bf16.mxu0 0
    %210 = vmatpush1.bf16.msra.mxu0 0
    %211 = vmatprep.subr.bf16.mxu0 0
    %212 = vmatpush1.bf16.msra.mxu0 0
    %213 = vmatprep.subr.bf16.mxu0 0
    %214 = vmatpush1.bf16.msra.mxu0 0
    %215 = vmatprep.subr.bf16.mxu0 0
    %216 = vmatpush1.bf16.msra.mxu0 0
    %217 = vmatprep.subr.bf16.mxu0 0
    %218 = vmatpush1.bf16.msra.mxu0 0
    %219 = vmatprep.subr.bf16.mxu0 0
    %220 = vmatpush1.bf16.msra.mxu0 0
    %221 = vmatprep.subr.bf16.mxu0 0
    %222 = vmatpush1.bf16.msra.mxu0 0
    %223 = vmatprep.subr.bf16.mxu0 0
    %224 = vmatpush1.bf16.msra.mxu0 0
    %225 = vmatprep.subr.bf16.mxu0 0
    %226 = vmatpush1.bf16.msra.mxu0 0
    %227 = vmatprep.subr.bf16.mxu0 0
    %228 = vmatpush1.bf16.msra.mxu0 0
    %229 = vmatprep.subr.bf16.mxu0 0
    %230 = vmatpush1.bf16.msra.mxu0 0
    %231 = vmatprep.mubr.bf16.mxu0 0
    %232 = vmatmul.mubr.bf16.gmra.mrb[0].mxu0 %v191
    %v233 = vpop.f32.mrb[0].mxu0
    %v234 = vadd.f32 %v162, %v233
    %v235 = vpop.f32.mrb[0].mxu0
    %v236 = vpop.f32.mrb[0].mxu0
    %v237 = vadd.f32 %v162, %v236
    %v238 = vpop.f32.mrb[0].mxu0
    %239 = vmatprep.mubr.bf16.mxu0 0
    %240 = vmatmul.mubr.bf16.gmra.mrb[0].mxu0 %v194
    %v241 = vpop.f32.mrb[0].mxu0
    %v242 = vadd.f32 %v162, %v241
    %v243 = vpop.f32.mrb[0].mxu0
    %v244 = vpop.f32.mrb[0].mxu0
    %v245 = vadd.f32 %v162, %v244
    %v246 = vpop.f32.mrb[0].mxu0
    %247 = vmatprep.mubr.bf16.mxu0 0
    %248 = vmatmul.mubr.bf16.gmra.mrb[0].mxu0 %v197
    %v249 = vpop.f32.mrb[0].mxu0
    %v250 = vadd.f32 %v162, %v249
    %v251 = vpop.f32.mrb[0].mxu0
    %v252 = vpop.f32.mrb[0].mxu0
    %v253 = vpop.f32.mrb[0].mxu0
    %254 = vdwg.mxu0
    %v255 = vld [vmem:[#allocation2] sm:$0xf]
    %v256 = vld [vmem:[#allocation2 + $0x4] sm:$0xf]
    %v257 = vld [vmem:[#allocation2 + $0x8] sm:$0xf]
    %v258 = vld [vmem:[#allocation2 + $0xc] sm:$0xf]
    %v259 = vld [vmem:[#allocation2 + $0x10] sm:$0xf]
    %v260 = vld [vmem:[#allocation10] sm:$0xf]
    %v261 = vld [vmem:[#allocation10 + $0x4] sm:$0xf]
    %v262 = vld [vmem:[#allocation10 + $0x8] sm:$0xf]
    %v263 = vld [vmem:[#allocation10 + $0xc] sm:$0xf]
    %v264 = vld [vmem:[#allocation11] sm:$0x1]
    %v266 = vlaneseq
    %v267 = vshrl.u32 %v266, 7
    %v268 = vsub.s32 0, %v267
    %v269 = vrot.slane %v264, %v268
    %v276 = vunpack.c.l.b16 %v255
    %v277 = vunpack.c.l.b16 %v256
    %v278 = vunpack.c.l.b16 %v257
    %v279 = vunpack.c.l.b16 %v258
    %v280 = vunpack.c.l.b16 %v259
    %v281 = vpack.c.b16 %v277, %v276
    %v282 = vpack.c.b16 %v279, %v278
    %v283 = vpack.c.b16 %v280, %v280
    %v288 = vunpack.c.l.b16 %v260
    %v289 = vunpack.c.l.b16 %v261
    %v290 = vunpack.c.l.b16 %v262
    %v291 = vunpack.c.l.b16 %v263
    %v292 = vpack.c.b16 %v289, %v288
    %v293 = vpack.c.b16 %v291, %v290
    %v297 = vsel %vm189, %v281, 0
    %v300 = vsel %vm189, %v282, 0
    %v303 = vsel %vm189, %v283, 0
    %305 = vmatprep.subr.bf16.mxu0 0
    %306 = vmatpush1.bf16.msra.mxu0 %v292
    %307 = vmatprep.subr.bf16.mxu0 0
    %308 = vmatpush1.bf16.msra.mxu0 %v293
    %309 = vmatprep.subr.bf16.mxu0 0
    %310 = vmatpush1.bf16.msra.mxu0 0
    %311 = vmatprep.subr.bf16.mxu0 0
    %312 = vmatpush1.bf16.msra.mxu0 0
    %313 = vmatprep.subr.bf16.mxu0 0
    %314 = vmatpush1.bf16.msra.mxu0 0
    %315 = vmatprep.subr.bf16.mxu0 0
    %316 = vmatpush1.bf16.msra.mxu0 0
    %317 = vmatprep.subr.bf16.mxu0 0
    %318 = vmatpush1.bf16.msra.mxu0 0
    %319 = vmatprep.subr.bf16.mxu0 0
    %320 = vmatpush1.bf16.msra.mxu0 0
    %321 = vmatprep.subr.bf16.mxu0 0
    %322 = vmatpush1.bf16.msra.mxu0 0
    %323 = vmatprep.subr.bf16.mxu0 0
    %324 = vmatpush1.bf16.msra.mxu0 0
    %325 = vmatprep.subr.bf16.mxu0 0
    %326 = vmatpush1.bf16.msra.mxu0 0
    %327 = vmatprep.subr.bf16.mxu0 0
    %328 = vmatpush1.bf16.msra.mxu0 0
    %329 = vmatprep.subr.bf16.mxu0 0
    %330 = vmatpush1.bf16.msra.mxu0 0
    %331 = vmatprep.subr.bf16.mxu0 0
    %332 = vmatpush1.bf16.msra.mxu0 0
    %333 = vmatprep.subr.bf16.mxu0 0
    %334 = vmatpush1.bf16.msra.mxu0 0
    %335 = vmatprep.subr.bf16.mxu0 0
    %336 = vmatpush1.bf16.msra.mxu0 0
    %337 = vmatprep.mubr.bf16.mxu0 0
    %338 = vmatmul.mubr.bf16.gmra.mrb[0].mxu0 %v297
    %v339 = vpop.f32.mrb[0].mxu0
    %v340 = vadd.f32 %v269, %v339
    %v341 = vpop.f32.mrb[0].mxu0
    %v342 = vpop.f32.mrb[0].mxu0
    %v343 = vadd.f32 %v269, %v342
    %v344 = vpop.f32.mrb[0].mxu0
    %345 = vmatprep.mubr.bf16.mxu0 0
    %346 = vmatmul.mubr.bf16.gmra.mrb[0].mxu0 %v300
    %v347 = vpop.f32.mrb[0].mxu0
    %v348 = vadd.f32 %v269, %v347
    %v349 = vpop.f32.mrb[0].mxu0
    %v350 = vpop.f32.mrb[0].mxu0
    %v351 = vadd.f32 %v269, %v350
    %v352 = vpop.f32.mrb[0].mxu0
    %353 = vmatprep.mubr.bf16.mxu0 0
    %354 = vmatmul.mubr.bf16.gmra.mrb[0].mxu0 %v303
    %v355 = vpop.f32.mrb[0].mxu0
    %v356 = vadd.f32 %v269, %v355
    %v357 = vpop.f32.mrb[0].mxu0
    %v358 = vpop.f32.mrb[0].mxu0
    %v359 = vpop.f32.mrb[0].mxu0
    %360 = vdwg.mxu0
    %vm361 = vcmask 31744
    %v362 = vsel %vm361, %v340, -inf
    %v363 = vrot.slane %v362, 4
    %v364 = vmax.f32 %v362, %v363
    %v365 = vrot.slane %v364, 2
    %v366 = vmax.f32 %v364, %v365
    %v367 = vrot.slane %v366, 1
    %v368 = vmax.f32 %v366, %v367
    %v369 = vsel %vm361, %v343, -inf
    %v370 = vrot.slane %v369, 4
    %v371 = vmax.f32 %v369, %v370
    %v372 = vrot.slane %v371, 2
    %v373 = vmax.f32 %v371, %v372
    %v374 = vrot.slane %v373, 1
    %v375 = vmax.f32 %v373, %v374
    %v376 = vsel %vm361, %v348, -inf
    %v377 = vrot.slane %v376, 4
    %v378 = vmax.f32 %v376, %v377
    %v379 = vrot.slane %v378, 2
    %v380 = vmax.f32 %v378, %v379
    %v381 = vrot.slane %v380, 1
    %v382 = vmax.f32 %v380, %v381
    %v383 = vsel %vm361, %v351, -inf
    %v384 = vrot.slane %v383, 4
    %v385 = vmax.f32 %v383, %v384
    %v386 = vrot.slane %v385, 2
    %v387 = vmax.f32 %v385, %v386
    %v388 = vrot.slane %v387, 1
    %v389 = vmax.f32 %v387, %v388
    %v390 = vsel %vm361, %v356, -inf
    %v391 = vrot.slane %v390, 4
    %v392 = vmax.f32 %v390, %v391
    %v393 = vrot.slane %v392, 2
    %v394 = vmax.f32 %v392, %v393
    %v395 = vrot.slane %v394, 1
    %v396 = vmax.f32 %v394, %v395
    %v397 = vsub.f32 %v340, %v368
    %v398 = vsub.f32 %v343, %v375
    %v399 = vsub.f32 %v348, %v382
    %v400 = vsub.f32 %v351, %v389
    %v401 = vsub.f32 %v356, %v396
    %v402 = vmul.f32 %v397, 1.442695
    %v403 = vpow.pop %v402
    %v404 = vmul.f32 %v398, 1.442695
    %v405 = vpow.pop %v404
    %v406 = vmul.f32 %v399, 1.442695
    %v407 = vpow.pop %v406
    %v408 = vmul.f32 %v400, 1.442695
    %v409 = vpow.pop %v408
    %v410 = vmul.f32 %v401, 1.442695
    %v411 = vpow.pop %v410
    %v412 = vsel %vm361, %v403, 0.0
    %v413 = vrot.slane %v412, 4
    %v414 = vadd.f32 %v412, %v413
    %v415 = vrot.slane %v414, 2
    %v416 = vadd.f32 %v414, %v415
    %v417 = vrot.slane %v416, 1
    %v418 = vadd.f32 %v416, %v417
    %v419 = vsel %vm361, %v405, 0.0
    %v420 = vrot.slane %v419, 4
    %v421 = vadd.f32 %v419, %v420
    %v422 = vrot.slane %v421, 2
    %v423 = vadd.f32 %v421, %v422
    %v424 = vrot.slane %v423, 1
    %v425 = vadd.f32 %v423, %v424
    %v426 = vsel %vm361, %v407, 0.0
    %v427 = vrot.slane %v426, 4
    %v428 = vadd.f32 %v426, %v427
    %v429 = vrot.slane %v428, 2
    %v430 = vadd.f32 %v428, %v429
    %v431 = vrot.slane %v430, 1
    %v432 = vadd.f32 %v430, %v431
    %v433 = vsel %vm361, %v409, 0.0
    %v434 = vrot.slane %v433, 4
    %v435 = vadd.f32 %v433, %v434
    %v436 = vrot.slane %v435, 2
    %v437 = vadd.f32 %v435, %v436
    %v438 = vrot.slane %v437, 1
    %v439 = vadd.f32 %v437, %v438
    %v440 = vsel %vm361, %v411, 0.0
    %v441 = vrot.slane %v440, 4
    %v442 = vadd.f32 %v440, %v441
    %v443 = vrot.slane %v442, 2
    %v444 = vadd.f32 %v442, %v443
    %v445 = vrot.slane %v444, 1
    %v446 = vadd.f32 %v444, %v445
    %v447 = vrcp.pop %v418
    %v448 = vrcp.pop %v425
    %v449 = vrcp.pop %v432
    %v450 = vrcp.pop %v439
    %v451 = vrcp.pop %v446
    %v452 = vmul.f32 %v403, %v447
    %v453 = vmul.f32 %v405, %v448
    %v454 = vmul.f32 %v407, %v449
    %v455 = vmul.f32 %v409, %v450
    %v456 = vmul.f32 %v411, %v451
    %v457 = vpack.c.bf16 %v452, %v452
    %v458 = vpack.c.bf16 %v453, %v453
    %v459 = vpack.c.bf16 %v454, %v454
    %v460 = vpack.c.bf16 %v455, %v455
    %v461 = vpack.c.bf16 %v456, %v456
    %v462 = vld [vmem:[#allocation13] sm:$0x3]
    %v468 = vunpack.c.l.b16 %v457
    %v469 = vunpack.c.l.b16 %v458
    %v470 = vunpack.c.l.b16 %v459
    %v471 = vunpack.c.l.b16 %v460
    %v472 = vunpack.c.l.b16 %v461
    %v473 = vpack.c.b16 %v469, %v468
    %v474 = vpack.c.b16 %v471, %v470
    %v475 = vpack.c.b16 %v472, %v472
    %v477 = vsel %vm361, %v473, 0
    %v480 = vsel %vm361, %v474, 0
    %v483 = vsel %vm361, %v475, 0
    %vm485 = vcmask 1041408
    %v487 = vsel %vm485, %v462, 0
    %489 = vmatprep.subr.bf16.mxu0 0
    %490 = vmatpush1.bf16.msra.mxu0 %v487
    %491 = vmatprep.subr.bf16.mxu0 0
    %492 = vmatpush1.bf16.msra.mxu0 0
    %493 = vmatprep.subr.bf16.mxu0 0
    %494 = vmatpush1.bf16.msra.mxu0 0
    %495 = vmatprep.subr.bf16.mxu0 0
    %496 = vmatpush1.bf16.msra.mxu0 0
    %497 = vmatprep.subr.bf16.mxu0 0
    %498 = vmatpush1.bf16.msra.mxu0 0
    %499 = vmatprep.subr.bf16.mxu0 0
    %500 = vmatpush1.bf16.msra.mxu0 0
    %501 = vmatprep.subr.bf16.mxu0 0
    %502 = vmatpush1.bf16.msra.mxu0 0
    %503 = vmatprep.subr.bf16.mxu0 0
    %504 = vmatpush1.bf16.msra.mxu0 0
    %505 = vmatprep.subr.bf16.mxu0 0
    %506 = vmatpush1.bf16.msra.mxu0 0
    %507 = vmatprep.subr.bf16.mxu0 0
    %508 = vmatpush1.bf16.msra.mxu0 0
    %509 = vmatprep.subr.bf16.mxu0 0
    %510 = vmatpush1.bf16.msra.mxu0 0
    %511 = vmatprep.subr.bf16.mxu0 0
    %512 = vmatpush1.bf16.msra.mxu0 0
    %513 = vmatprep.subr.bf16.mxu0 0
    %514 = vmatpush1.bf16.msra.mxu0 0
    %515 = vmatprep.subr.bf16.mxu0 0
    %516 = vmatpush1.bf16.msra.mxu0 0
    %517 = vmatprep.subr.bf16.mxu0 0
    %518 = vmatpush1.bf16.msra.mxu0 0
    %519 = vmatprep.subr.bf16.mxu0 0
    %520 = vmatpush1.bf16.msra.mxu0 0
    %521 = vmatprep.mubr.bf16.mxu0 0
    %522 = vmatmul.mubr.bf16.gmra.mrb[0].mxu0 %v477
    %v523 = vpop.f32.mrb[0].mxu0
    %v524 = vadd.f32 0.0, %v523
    %v525 = vpop.f32.mrb[0].mxu0
    %v526 = vpop.f32.mrb[0].mxu0
    %v527 = vadd.f32 0.0, %v526
    %v528 = vpop.f32.mrb[0].mxu0
    %529 = vmatprep.mubr.bf16.mxu0 0
    %530 = vmatmul.mubr.bf16.gmra.mrb[0].mxu0 %v480
    %v531 = vpop.f32.mrb[0].mxu0
    %v532 = vadd.f32 0.0, %v531
    %v533 = vpop.f32.mrb[0].mxu0
    %v534 = vpop.f32.mrb[0].mxu0
    %v535 = vadd.f32 0.0, %v534
    %v536 = vpop.f32.mrb[0].mxu0
    %537 = vmatprep.mubr.bf16.mxu0 0
    %538 = vmatmul.mubr.bf16.gmra.mrb[0].mxu0 %v483
    %v539 = vpop.f32.mrb[0].mxu0
    %v540 = vadd.f32 0.0, %v539
    %v541 = vpop.f32.mrb[0].mxu0
    %v542 = vpop.f32.mrb[0].mxu0
    %v543 = vpop.f32.mrb[0].mxu0
    %544 = vdwg.mxu0
    %v545 = vmul.f32 %v524, %v234
    %v546 = vmul.f32 %v527, %v237
    %v547 = vmul.f32 %v532, %v242
    %v548 = vmul.f32 %v535, %v245
    %v549 = vmul.f32 %v540, %v250
    %v550 = vsel %vm189, %v545, 0.0
    %v551 = vrot.slane %v550, 4
    %v552 = vadd.f32 %v550, %v551
    %v553 = vrot.slane %v552, 2
    %v554 = vadd.f32 %v552, %v553
    %v555 = vrot.slane %v554, 1
    %v556 = vadd.f32 %v554, %v555
    %v557 = vsel %vm189, %v546, 0.0
    %v558 = vrot.slane %v557, 4
    %v559 = vadd.f32 %v557, %v558
    %v560 = vrot.slane %v559, 2
    %v561 = vadd.f32 %v559, %v560
    %v562 = vrot.slane %v561, 1
    %v563 = vadd.f32 %v561, %v562
    %v564 = vsel %vm189, %v547, 0.0
    %v565 = vrot.slane %v564, 4
    %v566 = vadd.f32 %v564, %v565
    %v567 = vrot.slane %v566, 2
    %v568 = vadd.f32 %v566, %v567
    %v569 = vrot.slane %v568, 1
    %v570 = vadd.f32 %v568, %v569
    %v571 = vsel %vm189, %v548, 0.0
    %v572 = vrot.slane %v571, 4
    %v573 = vadd.f32 %v571, %v572
    %v574 = vrot.slane %v573, 2
    %v575 = vadd.f32 %v573, %v574
    %v576 = vrot.slane %v575, 1
    %v577 = vadd.f32 %v575, %v576
    %v578 = vsel %vm189, %v549, 0.0
    %v579 = vrot.slane %v578, 4
    %v580 = vadd.f32 %v578, %v579
    %v581 = vrot.slane %v580, 2
    %v582 = vadd.f32 %v580, %v581
    %v583 = vrot.slane %v582, 1
    %v584 = vadd.f32 %v582, %v583
    %v585 = vpack.c.bf16 %v556, %v556
    %v586 = vpack.c.bf16 %v563, %v563
    %v587 = vpack.c.bf16 %v570, %v570
    %v588 = vpack.c.bf16 %v577, %v577
    %v589 = vpack.c.bf16 %v584, %v584
    %v590 = vld [vmem:[#allocation14] sm:$0xf]
    %v591 = vld [vmem:[#allocation14 + $0x4] sm:$0xf]
    %v592 = vld [vmem:[#allocation14 + $0x8] sm:$0xf]
    %v593 = vld [vmem:[#allocation14 + $0xc] sm:$0xf]
    %v594 = vld [vmem:[#allocation16] sm:$0x1]
    %v596 = vlaneseq
    %v597 = vshrl.u32 %v596, 7
    %v598 = vsub.s32 0, %v597
    %v599 = vrot.slane %v594, %v598
    %v606 = vunpack.c.l.b16 %v585
    %v607 = vunpack.c.l.b16 %v586
    %v608 = vunpack.c.l.b16 %v587
    %v609 = vunpack.c.l.b16 %v588
    %v610 = vunpack.c.l.b16 %v589
    %vm611 = vcmask 1041409
    %v612 = vsel %vm611, %v607, %v606
    %vm613 = vcmask 1042434
    %v614 = vsel %vm613, %v608, %v612
    %vm615 = vcmask 1043459
    %v616 = vsel %vm615, %v609, %v614
    %vm617 = vcmask 1044484
    %v618 = vsel %vm617, %v610, %v616
    %v619 = vpack.c.b16 %v618, %v618
    %v624 = vunpack.c.l.b16 %v590
    %v625 = vunpack.c.l.b16 %v591
    %v626 = vunpack.c.l.b16 %v592
    %v627 = vunpack.c.l.b16 %v593
    %v628 = vpack.c.b16 %v625, %v624
    %v629 = vpack.c.b16 %v627, %v626
    %v633 = vsel %vm189, %v619, 0
    %635 = vmatprep.subr.bf16.mxu0 0
    %636 = vmatpush1.bf16.msra.mxu0 %v628
    %637 = vmatprep.subr.bf16.mxu0 0
    %638 = vmatpush1.bf16.msra.mxu0 %v629
    %639 = vmatprep.subr.bf16.mxu0 0
    %640 = vmatpush1.bf16.msra.mxu0 0
    %641 = vmatprep.subr.bf16.mxu0 0
    %642 = vmatpush1.bf16.msra.mxu0 0
    %643 = vmatprep.subr.bf16.mxu0 0
    %644 = vmatpush1.bf16.msra.mxu0 0
    %645 = vmatprep.subr.bf16.mxu0 0
    %646 = vmatpush1.bf16.msra.mxu0 0
    %647 = vmatprep.subr.bf16.mxu0 0
    %648 = vmatpush1.bf16.msra.mxu0 0
    %649 = vmatprep.subr.bf16.mxu0 0
    %650 = vmatpush1.bf16.msra.mxu0 0
    %651 = vmatprep.subr.bf16.mxu0 0
    %652 = vmatpush1.bf16.msra.mxu0 0
    %653 = vmatprep.subr.bf16.mxu0 0
    %654 = vmatpush1.bf16.msra.mxu0 0
    %655 = vmatprep.subr.bf16.mxu0 0
    %656 = vmatpush1.bf16.msra.mxu0 0
    %657 = vmatprep.subr.bf16.mxu0 0
    %658 = vmatpush1.bf16.msra.mxu0 0
    %659 = vmatprep.subr.bf16.mxu0 0
    %660 = vmatpush1.bf16.msra.mxu0 0
    %661 = vmatprep.subr.bf16.mxu0 0
    %662 = vmatpush1.bf16.msra.mxu0 0
    %663 = vmatprep.subr.bf16.mxu0 0
    %664 = vmatpush1.bf16.msra.mxu0 0
    %665 = vmatprep.subr.bf16.mxu0 0
    %666 = vmatpush1.bf16.msra.mxu0 0
    %667 = vmatprep.mubr.bf16.mxu0 0
    %668 = vmatmul.mubr.bf16.gmra.mrb[0].mxu0 %v633
    %v669 = vpop.f32.mrb[0].mxu0
    %v670 = vadd.f32 %v599, %v669
    %v671 = vpop.f32.mrb[0].mxu0
    %v672 = vpop.f32.mrb[0].mxu0
    %v673 = vpop.f32.mrb[0].mxu0
    %674 = vdwg.mxu0
    %vm675 = vcmask 258048
    %676 = vst.msk [vmem:[#allocation17] sm:$0x1f] %vm675, %v670
    // Predicated region
    $region74: #{tpu_custom_call.1} parent=1 // pred_check
      _
    $region75: #{tpu_custom_call.1} parent=1 // pred_check_branch
      %678 = sbr.rel (0) target = $region77
    $region76: #{tpu_custom_call.1} parent=1 // pred_region
      %s680 = ssub.s32 128, 128
      %681 = vsyncadd [#allocation4], %s680
      %s683 = sshll.u32 [#allocation17], 4
      %s684 = int_to_ptr.vmem [resolvable:$true] %s683
      %686 = dma.vmem_to_hbm [thread:$0]  %s684, 128, %s9, [#allocation4]
    $region77: #{tpu_custom_call.1} parent=1 // pred_fallthru
      _
    // Predicated region
    $region78: #{tpu_custom_call.1} parent=1 // pred_check
      _
    $region79: #{tpu_custom_call.1} parent=1 // pred_check_branch
      %688 = sbr.rel (0) target = $region81
    $region80: #{tpu_custom_call.1} parent=1 // pred_region
      %689 = dma.done [#allocation4], 128
    $region81: #{tpu_custom_call.1} parent=1 // pred_fallthru
      _
    %690 = vsyncpa [#allocation3], 1
    %691 = vsyncpa [#allocation6], 1
    %692 = vsyncpa [#allocation9], 1
    %693 = vsyncpa [#allocation12], 1
    %694 = vsyncpa [#allocation15], 1
    %695 = vsyncpa [#allocation4], 1

// kernel: tpu_custom_call.1
$region0: #{tpu_custom_call.1}
  #allocation0 [shape = 'u32[]', space=smem, size = 0x4, offset = 0x4, fixed_abs, tag = 'smem constant byte address 0x4 - core index']
  #allocation1 [shape = 'u32[144,128]{1,0:T(1,128)}', space=vmem, size = 0x12000, scoped, tag = 'internal scratch']
  %s0 = inlined_call_operand.hbm [shape: bf16[40,32], index: 0, kind: input, shape index: {}]
  %s1 = inlined_call_operand.hbm [shape: bf16[40,32], index: 1, kind: input, shape index: {}]
  %s2 = inlined_call_operand.hbm [shape: bf16[32,32], index: 2, kind: input, shape index: {}]
  %s3 = inlined_call_operand.hbm [shape: f32[1,32], index: 3, kind: input, shape index: {}]
  %s4 = inlined_call_operand.hbm [shape: bf16[32,4], index: 4, kind: input, shape index: {}]
  %s5 = inlined_call_operand.hbm [shape: f32[1,4], index: 5, kind: input, shape index: {}]
  %s6 = inlined_call_operand.hbm [shape: bf16[4,32], index: 6, kind: input, shape index: {}]
  %s7 = inlined_call_operand.hbm [shape: bf16[32,32], index: 7, kind: input, shape index: {}]
  %s8 = inlined_call_operand.hbm [shape: f32[1,32], index: 8, kind: input, shape index: {}]
  %s9 = inlined_call_operand.hbm [shape: f32[5,32], index: 9, kind: output, shape index: {}]
  %s10 = sld [smem:[#allocation0]]
  $region82: #{tpu_custom_call.1} parent=0
    _
  %s12 = ssub.s32 1, %s10
  %s13 = scalar_select 0, %s12, %s10
  $region1: #{tpu_custom_call.1} parent=0
    #allocation2 [shape = 'u8[10240]{0}', space=vmem, size = 0x2800, scoped, tag = 'input window, operand 0, single buffered']
    #allocation3 [shape = 's32[1]{0}', space=sflag, size = 0x4, scoped, tag = 'scoped memory for tpu_custom_call.1']
    #allocation4 [shape = 's32[1]{0}', space=sflag, size = 0x4, scoped, tag = 'scoped memory for tpu_custom_call.1']
    #allocation5 [shape = 'u8[10240]{0}', space=vmem, size = 0x2800, scoped, tag = 'input window, operand 1, single buffered']
    #allocation6 [shape = 's32[1]{0}', space=sflag, size = 0x4, scoped, tag = 'scoped memory for tpu_custom_call.1']
    #allocation7 [shape = 'u8[8192]{0}', space=vmem, size = 0x2000, scoped, tag = 'input window, operand 2, single buffered']
    #allocation8 [shape = 'u8[512]{0}', space=vmem, size = 0x400, scoped, tag = 'input window, operand 3, single buffered']
    #allocation9 [shape = 's32[1]{0}', space=sflag, size = 0x4, scoped, tag = 'scoped memory for tpu_custom_call.1']
    #allocation10 [shape = 'u8[8192]{0}', space=vmem, size = 0x2000, scoped, tag = 'input window, operand 4, single buffered']
    #allocation11 [shape = 'u8[512]{0}', space=vmem, size = 0x400, scoped, tag = 'input window, operand 5, single buffered']
    #allocation12 [shape = 's32[1]{0}', space=sflag, size = 0x4, scoped, tag = 'scoped memory for tpu_custom_call.1']
    #allocation13 [shape = 'u8[1024]{0}', space=vmem, size = 0x400, scoped, tag = 'input window, operand 6, single buffered']
    #allocation14 [shape = 'u8[8192]{0}', space=vmem, size = 0x2000, scoped, tag = 'input window, operand 7, single buffered']
    #allocation15 [shape = 's32[1]{0}', space=sflag, size = 0x4, scoped, tag = 'scoped memory for tpu_custom_call.1']
    #allocation16 [shape = 'u8[512]{0}', space=vmem, size = 0x400, scoped, tag = 'input window, operand 8, single buffered']
    #allocation17 [shape = 'u8[4096]{0}', space=vmem, size = 0x1000, scoped, tag = 'output window, operand 0, single buffered']
    %14 = vsyncpa [#allocation3], 0
    %15 = vsyncpa [#allocation6], 0
    %16 = vsyncpa [#allocation9], 0
    %17 = vsyncpa [#allocation12], 0
    %18 = vsyncpa [#allocation15], 0
    %19 = vsyncpa [#allocation4], 0
    // Predicated region
    $region2: #{tpu_custom_call.1} parent=1 // pred_check
      _
    $region3: #{tpu_custom_call.1} parent=1 // pred_check_branch
      %21 = sbr.rel (0) target = $region5
    $region4: #{tpu_custom_call.1} parent=1 // pred_region
      %s23 = ssub.s32 320, 320
      %24 = vsyncadd [#allocation3], %s23
      %s25 = sshll.u32 [#allocation2], 4
      %s26 = int_to_ptr.vmem [resolvable:$true] %s25
      %31 = dma.hbm_to_vmem [thread:$0]  %s0, 320, %s26, [#allocation3], 64, 64, 4
    $region5: #{tpu_custom_call.1} parent=1 // pred_fallthru
      _
    // Predicated region
    $region6: #{tpu_custom_call.1} parent=1 // pred_check
      _
    $region7: #{tpu_custom_call.1} parent=1 // pred_check_branch
      %33 = sbr.rel (0) target = $region9
    $region8: #{tpu_custom_call.1} parent=1 // pred_region
      %s35 = ssub.s32 320, 320
      %36 = vsyncadd [#allocation6], %s35
      %s37 = sshll.u32 [#allocation5], 4
      %s38 = int_to_ptr.vmem [resolvable:$true] %s37
      %43 = dma.hbm_to_vmem [thread:$0]  %s1, 320, %s38, [#allocation6], 64, 64, 4
    $region9: #{tpu_custom_call.1} parent=1 // pred_fallthru
      _
    // Predicated region
    $region10: #{tpu_custom_call.1} parent=1 // pred_check
      _
    $region11: #{tpu_custom_call.1} parent=1 // pred_check_branch
      %45 = sbr.rel (0) target = $region13
    $region12: #{tpu_custom_call.1} parent=1 // pred_region
      %s47 = ssub.s32 256, 256
      %48 = vsyncadd [#allocation6], %s47
      %s49 = sshll.u32 [#allocation7], 4
      %s50 = int_to_ptr.vmem [resolvable:$true] %s49
      %55 = dma.hbm_to_vmem [thread:$0]  %s2, 256, %s50, [#allocation6], 64, 64, 4
    $region13: #{tpu_custom_call.1} parent=1 // pred_fallthru
      _
    // Predicated region
    $region14: #{tpu_custom_call.1} parent=1 // pred_check
      _
    $region15: #{tpu_custom_call.1} parent=1 // pred_check_branch
      %57 = sbr.rel (0) target = $region17
    $region16: #{tpu_custom_call.1} parent=1 // pred_region
      %s59 = ssub.s32 16, 16
      %60 = vsyncadd [#allocation9], %s59
      %s62 = sshll.u32 [#allocation8], 4
      %s63 = int_to_ptr.vmem [resolvable:$true] %s62
      %65 = dma.hbm_to_vmem [thread:$0]  %s3, 16, %s63, [#allocation9]
    $region17: #{tpu_custom_call.1} parent=1 // pred_fallthru
      _
    // Predicated region
    $region18: #{tpu_custom_call.1} parent=1 // pred_check
      _
    $region19: #{tpu_custom_call.1} parent=1 // pred_check_branch
      %67 = sbr.rel (0) target = $region21
    $region20: #{tpu_custom_call.1} parent=1 // pred_region
      %s69 = ssub.s32 256, 256
      %70 = vsyncadd [#allocation9], %s69
      %s71 = sshll.u32 [#allocation10], 4
      %s72 = int_to_ptr.vmem [resolvable:$true] %s71
      %77 = dma.hbm_to_vmem [thread:$0]  %s4, 256, %s72, [#allocation9], 64, 64, 4
    $region21: #{tpu_custom_call.1} parent=1 // pred_fallthru
      _
    // Predicated region
    $region22: #{tpu_custom_call.1} parent=1 // pred_check
      _
    $region23: #{tpu_custom_call.1} parent=1 // pred_check_branch
      %79 = sbr.rel (0) target = $region25
    $region24: #{tpu_custom_call.1} parent=1 // pred_region
      %s81 = ssub.s32 16, 16
      %82 = vsyncadd [#allocation12], %s81
      %s84 = sshll.u32 [#allocation11], 4
      %s85 = int_to_ptr.vmem [resolvable:$true] %s84
      %87 = dma.hbm_to_vmem [thread:$0]  %s5, 16, %s85, [#allocation12]
    $region25: #{tpu_custom_call.1} parent=1 // pred_fallthru
      _
    // Predicated region
    $region26: #{tpu_custom_call.1} parent=1 // pred_check
      _
    $region27: #{tpu_custom_call.1} parent=1 // pred_check_branch
      %89 = sbr.rel (0) target = $region29
    $region28: #{tpu_custom_call.1} parent=1 // pred_region
      %s91 = ssub.s32 32, 32
      %92 = vsyncadd [#allocation12], %s91
      %s94 = sshll.u32 [#allocation13], 4
      %s95 = int_to_ptr.vmem [resolvable:$true] %s94
      %97 = dma.hbm_to_vmem [thread:$0]  %s6, 32, %s95, [#allocation12]
    $region29: #{tpu_custom_call.1} parent=1 // pred_fallthru
      _
    // Predicated region
    $region30: #{tpu_custom_call.1} parent=1 // pred_check
      _
    $region31: #{tpu_custom_call.1} parent=1 // pred_check_branch
      %99 = sbr.rel (0) target = $region33
    $region32: #{tpu_custom_call.1} parent=1 // pred_region
      %s101 = ssub.s32 256, 256
      %102 = vsyncadd [#allocation15], %s101
      %s103 = sshll.u32 [#allocation14], 4
      %s104 = int_to_ptr.vmem [resolvable:$true] %s103
      %109 = dma.hbm_to_vmem [thread:$0]  %s7, 256, %s104, [#allocation15], 64, 64, 4
    $region33: #{tpu_custom_call.1} parent=1 // pred_fallthru
      _
    // Predicated region
    $region34: #{tpu_custom_call.1} parent=1 // pred_check
      _
    $region35: #{tpu_custom_call.1} parent=1 // pred_check_branch
      %111 = sbr.rel (0) target = $region37
    $region36: #{tpu_custom_call.1} parent=1 // pred_region
      %s113 = ssub.s32 16, 16
      %114 = vsyncadd [#allocation15], %s113
      %s116 = sshll.u32 [#allocation16], 4
      %s117 = int_to_ptr.vmem [resolvable:$true] %s116
      %119 = dma.hbm_to_vmem [thread:$0]  %s8, 16, %s117, [#allocation15]
    $region37: #{tpu_custom_call.1} parent=1 // pred_fallthru
      _
    // Predicated region
    $region38: #{tpu_custom_call.1} parent=1 // pred_check
      _
    $region39: #{tpu_custom_call.1} parent=1 // pred_check_branch
      %121 = sbr.rel (0) target = $region41
    $region40: #{tpu_custom_call.1} parent=1 // pred_region
      %122 = dma.done [#allocation3], 320
    $region41: #{tpu_custom_call.1} parent=1 // pred_fallthru
      _
    // Predicated region
    $region42: #{tpu_custom_call.1} parent=1 // pred_check
      _
    $region43: #{tpu_custom_call.1} parent=1 // pred_check_branch
      %124 = sbr.rel (0) target = $region45
    $region44: #{tpu_custom_call.1} parent=1 // pred_region
      %125 = dma.done [#allocation6], 320
    $region45: #{tpu_custom_call.1} parent=1 // pred_fallthru
      _
    // Predicated region
    $region46: #{tpu_custom_call.1} parent=1 // pred_check
      _
    $region47: #{tpu_custom_call.1} parent=1 // pred_check_branch
      %127 = sbr.rel (0) target = $region49
    $region48: #{tpu_custom_call.1} parent=1 // pred_region
      %128 = dma.done [#allocation6], 256
    $region49: #{tpu_custom_call.1} parent=1 // pred_fallthru
      _
    // Predicated region
    $region50: #{tpu_custom_call.1} parent=1 // pred_check
      _
    $region51: #{tpu_custom_call.1} parent=1 // pred_check_branch
      %130 = sbr.rel (0) target = $region53
    $region52: #{tpu_custom_call.1} parent=1 // pred_region
      %131 = dma.done [#allocation9], 16
    $region53: #{tpu_custom_call.1} parent=1 // pred_fallthru
      _
    // Predicated region
    $region54: #{tpu_custom_call.1} parent=1 // pred_check
      _
    $region55: #{tpu_custom_call.1} parent=1 // pred_check_branch
      %133 = sbr.rel (0) target = $region57
    $region56: #{tpu_custom_call.1} parent=1 // pred_region
      %134 = dma.done [#allocation9], 256
    $region57: #{tpu_custom_call.1} parent=1 // pred_fallthru
      _
    // Predicated region
    $region58: #{tpu_custom_call.1} parent=1 // pred_check
      _
    $region59: #{tpu_custom_call.1} parent=1 // pred_check_branch
      %136 = sbr.rel (0) target = $region61
    $region60: #{tpu_custom_call.1} parent=1 // pred_region
      %137 = dma.done [#allocation12], 16
    $region61: #{tpu_custom_call.1} parent=1 // pred_fallthru
      _
    // Predicated region
    $region62: #{tpu_custom_call.1} parent=1 // pred_check
      _
    $region63: #{tpu_custom_call.1} parent=1 // pred_check_branch
      %139 = sbr.rel (0) target = $region65
    $region64: #{tpu_custom_call.1} parent=1 // pred_region
      %140 = dma.done [#allocation12], 32
    $region65: #{tpu_custom_call.1} parent=1 // pred_fallthru
      _
    // Predicated region
    $region66: #{tpu_custom_call.1} parent=1 // pred_check
      _
    $region67: #{tpu_custom_call.1} parent=1 // pred_check_branch
      %142 = sbr.rel (0) target = $region69
    $region68: #{tpu_custom_call.1} parent=1 // pred_region
      %143 = dma.done [#allocation15], 256
    $region69: #{tpu_custom_call.1} parent=1 // pred_fallthru
      _
    // Predicated region
    $region70: #{tpu_custom_call.1} parent=1 // pred_check
      _
    $region71: #{tpu_custom_call.1} parent=1 // pred_check_branch
      %145 = sbr.rel (0) target = $region73
    $region72: #{tpu_custom_call.1} parent=1 // pred_region
      %146 = dma.done [#allocation15], 16
    $region73: #{tpu_custom_call.1} parent=1 // pred_fallthru
      _
    %v148 = vld [vmem:[#allocation5] sm:$0xf]
    %v149 = vld [vmem:[#allocation5 + $0x4] sm:$0xf]
    %v150 = vld [vmem:[#allocation5 + $0x8] sm:$0xf]
    %v151 = vld [vmem:[#allocation5 + $0xc] sm:$0xf]
    %v152 = vld [vmem:[#allocation5 + $0x10] sm:$0xf]
    %v153 = vld [vmem:[#allocation7] sm:$0xf]
    %v154 = vld [vmem:[#allocation7 + $0x4] sm:$0xf]
    %v155 = vld [vmem:[#allocation7 + $0x8] sm:$0xf]
    %v156 = vld [vmem:[#allocation7 + $0xc] sm:$0xf]
    %v157 = vld [vmem:[#allocation8] sm:$0x1]
    %v159 = vlaneseq
    %v160 = vshrl.u32 %v159, 7
    %v161 = vsub.s32 0, %v160
    %v162 = vrot.slane %v157, %v161
    %v169 = vunpack.c.l.b16 %v148
    %v170 = vunpack.c.l.b16 %v149
    %v171 = vunpack.c.l.b16 %v150
    %v172 = vunpack.c.l.b16 %v151
    %v173 = vunpack.c.l.b16 %v152
    %v174 = vpack.c.b16 %v170, %v169
    %v175 = vpack.c.b16 %v172, %v171
    %v176 = vpack.c.b16 %v173, %v173
    %v181 = vunpack.c.l.b16 %v153
    %v182 = vunpack.c.l.b16 %v154
    %v183 = vunpack.c.l.b16 %v155
    %v184 = vunpack.c.l.b16 %v156
    %v185 = vpack.c.b16 %v182, %v181
    %v186 = vpack.c.b16 %v184, %v183
    %vm189 = vcmask 261120
    %v191 = vsel %vm189, %v174, 0
    %v194 = vsel %vm189, %v175, 0
    %v197 = vsel %vm189, %v176, 0
    %199 = vmatprep.subr.bf16.mxu0 0
    %200 = vmatpush1.bf16.msra.mxu0 %v185
    %201 = vmatprep.subr.bf16.mxu0 0
    %202 = vmatpush1.bf16.msra.mxu0 %v186
    %203 = vmatprep.subr.bf16.mxu0 0
    %204 = vmatpush1.bf16.msra.mxu0 0
    %205 = vmatprep.subr.bf16.mxu0 0
    %206 = vmatpush1.bf16.msra.mxu0 0
    %207 = vmatprep.subr.bf16.mxu0 0
    %208 = vmatpush1.bf16.msra.mxu0 0
    %209 = vmatprep.subr.bf16.mxu0 0
    %210 = vmatpush1.bf16.msra.mxu0 0
    %211 = vmatprep.subr.bf16.mxu0 0
    %212 = vmatpush1.bf16.msra.mxu0 0
    %213 = vmatprep.subr.bf16.mxu0 0
    %214 = vmatpush1.bf16.msra.mxu0 0
    %215 = vmatprep.subr.bf16.mxu0 0
    %216 = vmatpush1.bf16.msra.mxu0 0
    %217 = vmatprep.subr.bf16.mxu0 0
    %218 = vmatpush1.bf16.msra.mxu0 0
    %219 = vmatprep.subr.bf16.mxu0 0
    %220 = vmatpush1.bf16.msra.mxu0 0
    %221 = vmatprep.subr.bf16.mxu0 0
    %222 = vmatpush1.bf16.msra.mxu0 0
    %223 = vmatprep.subr.bf16.mxu0 0
    %224 = vmatpush1.bf16.msra.mxu0 0
    %225 = vmatprep.subr.bf16.mxu0 0
    %226 = vmatpush1.bf16.msra.mxu0 0
    %227 = vmatprep.subr.bf16.mxu0 0
    %228 = vmatpush1.bf16.msra.mxu0 0
    %229 = vmatprep.subr.bf16.mxu0 0
    %230 = vmatpush1.bf16.msra.mxu0 0
    %231 = vmatprep.mubr.bf16.mxu0 0
    %232 = vmatmul.mubr.bf16.gmra.mrb[0].mxu0 %v191
    %v233 = vpop.f32.mrb[0].mxu0
    %v234 = vadd.f32 %v162, %v233
    %v235 = vpop.f32.mrb[0].mxu0
    %v236 = vpop.f32.mrb[0].mxu0
    %v237 = vadd.f32 %v162, %v236
    %v238 = vpop.f32.mrb[0].mxu0
    %239 = vmatprep.mubr.bf16.mxu0 0
    %240 = vmatmul.mubr.bf16.gmra.mrb[0].mxu0 %v194
    %v241 = vpop.f32.mrb[0].mxu0
    %v242 = vadd.f32 %v162, %v241
    %v243 = vpop.f32.mrb[0].mxu0
    %v244 = vpop.f32.mrb[0].mxu0
    %v245 = vadd.f32 %v162, %v244
    %v246 = vpop.f32.mrb[0].mxu0
    %247 = vmatprep.mubr.bf16.mxu0 0
    %248 = vmatmul.mubr.bf16.gmra.mrb[0].mxu0 %v197
    %v249 = vpop.f32.mrb[0].mxu0
    %v250 = vadd.f32 %v162, %v249
    %v251 = vpop.f32.mrb[0].mxu0
    %v252 = vpop.f32.mrb[0].mxu0
    %v253 = vpop.f32.mrb[0].mxu0
    %254 = vdwg.mxu0
    %v255 = vld [vmem:[#allocation2] sm:$0xf]
    %v256 = vld [vmem:[#allocation2 + $0x4] sm:$0xf]
    %v257 = vld [vmem:[#allocation2 + $0x8] sm:$0xf]
    %v258 = vld [vmem:[#allocation2 + $0xc] sm:$0xf]
    %v259 = vld [vmem:[#allocation2 + $0x10] sm:$0xf]
    %v260 = vld [vmem:[#allocation10] sm:$0xf]
    %v261 = vld [vmem:[#allocation10 + $0x4] sm:$0xf]
    %v262 = vld [vmem:[#allocation10 + $0x8] sm:$0xf]
    %v263 = vld [vmem:[#allocation10 + $0xc] sm:$0xf]
    %v264 = vld [vmem:[#allocation11] sm:$0x1]
    %v266 = vlaneseq
    %v267 = vshrl.u32 %v266, 7
    %v268 = vsub.s32 0, %v267
    %v269 = vrot.slane %v264, %v268
    %v276 = vunpack.c.l.b16 %v255
    %v277 = vunpack.c.l.b16 %v256
    %v278 = vunpack.c.l.b16 %v257
    %v279 = vunpack.c.l.b16 %v258
    %v280 = vunpack.c.l.b16 %v259
    %v281 = vpack.c.b16 %v277, %v276
    %v282 = vpack.c.b16 %v279, %v278
    %v283 = vpack.c.b16 %v280, %v280
    %v288 = vunpack.c.l.b16 %v260
    %v289 = vunpack.c.l.b16 %v261
    %v290 = vunpack.c.l.b16 %v262
    %v291 = vunpack.c.l.b16 %v263
    %v292 = vpack.c.b16 %v289, %v288
    %v293 = vpack.c.b16 %v291, %v290
    %v297 = vsel %vm189, %v281, 0
    %v300 = vsel %vm189, %v282, 0
    %v303 = vsel %vm189, %v283, 0
    %305 = vmatprep.subr.bf16.mxu0 0
    %306 = vmatpush1.bf16.msra.mxu0 %v292
    %307 = vmatprep.subr.bf16.mxu0 0
    %308 = vmatpush1.bf16.msra.mxu0 %v293
    %309 = vmatprep.subr.bf16.mxu0 0
    %310 = vmatpush1.bf16.msra.mxu0 0
    %311 = vmatprep.subr.bf16.mxu0 0
    %312 = vmatpush1.bf16.msra.mxu0 0
    %313 = vmatprep.subr.bf16.mxu0 0
    %314 = vmatpush1.bf16.msra.mxu0 0
    %315 = vmatprep.subr.bf16.mxu0 0
    %316 = vmatpush1.bf16.msra.mxu0 0
    %317 = vmatprep.subr.bf16.mxu0 0
    %318 = vmatpush1.bf16.msra.mxu0 0
    %319 = vmatprep.subr.bf16.mxu0 0
    %320 = vmatpush1.bf16.msra.mxu0 0
    %321 = vmatprep.subr.bf16.mxu0 0
    %322 = vmatpush1.bf16.msra.mxu0 0
    %323 = vmatprep.subr.bf16.mxu0 0
    %324 = vmatpush1.bf16.msra.mxu0 0
    %325 = vmatprep.subr.bf16.mxu0 0
    %326 = vmatpush1.bf16.msra.mxu0 0
    %327 = vmatprep.subr.bf16.mxu0 0
    %328 = vmatpush1.bf16.msra.mxu0 0
    %329 = vmatprep.subr.bf16.mxu0 0
    %330 = vmatpush1.bf16.msra.mxu0 0
    %331 = vmatprep.subr.bf16.mxu0 0
    %332 = vmatpush1.bf16.msra.mxu0 0
    %333 = vmatprep.subr.bf16.mxu0 0
    %334 = vmatpush1.bf16.msra.mxu0 0
    %335 = vmatprep.subr.bf16.mxu0 0
    %336 = vmatpush1.bf16.msra.mxu0 0
    %337 = vmatprep.mubr.bf16.mxu0 0
    %338 = vmatmul.mubr.bf16.gmra.mrb[0].mxu0 %v297
    %v339 = vpop.f32.mrb[0].mxu0
    %v340 = vadd.f32 %v269, %v339
    %v341 = vpop.f32.mrb[0].mxu0
    %v342 = vpop.f32.mrb[0].mxu0
    %v343 = vadd.f32 %v269, %v342
    %v344 = vpop.f32.mrb[0].mxu0
    %345 = vmatprep.mubr.bf16.mxu0 0
    %346 = vmatmul.mubr.bf16.gmra.mrb[0].mxu0 %v300
    %v347 = vpop.f32.mrb[0].mxu0
    %v348 = vadd.f32 %v269, %v347
    %v349 = vpop.f32.mrb[0].mxu0
    %v350 = vpop.f32.mrb[0].mxu0
    %v351 = vadd.f32 %v269, %v350
    %v352 = vpop.f32.mrb[0].mxu0
    %353 = vmatprep.mubr.bf16.mxu0 0
    %354 = vmatmul.mubr.bf16.gmra.mrb[0].mxu0 %v303
    %v355 = vpop.f32.mrb[0].mxu0
    %v356 = vadd.f32 %v269, %v355
    %v357 = vpop.f32.mrb[0].mxu0
    %v358 = vpop.f32.mrb[0].mxu0
    %v359 = vpop.f32.mrb[0].mxu0
    %360 = vdwg.mxu0
    %vm361 = vcmask 31744
    %v362 = vsel %vm361, %v340, -inf
    %v363 = vrot.slane %v362, 4
    %v364 = vmax.f32 %v362, %v363
    %v365 = vrot.slane %v364, 2
    %v366 = vmax.f32 %v364, %v365
    %v367 = vrot.slane %v366, 1
    %v368 = vmax.f32 %v366, %v367
    %v369 = vsel %vm361, %v343, -inf
    %v370 = vrot.slane %v369, 4
    %v371 = vmax.f32 %v369, %v370
    %v372 = vrot.slane %v371, 2
    %v373 = vmax.f32 %v371, %v372
    %v374 = vrot.slane %v373, 1
    %v375 = vmax.f32 %v373, %v374
    %v376 = vsel %vm361, %v348, -inf
    %v377 = vrot.slane %v376, 4
    %v378 = vmax.f32 %v376, %v377
    %v379 = vrot.slane %v378, 2
    %v380 = vmax.f32 %v378, %v379
    %v381 = vrot.slane %v380, 1
    %v382 = vmax.f32 %v380, %v381
    %v383 = vsel %vm361, %v351, -inf
    %v384 = vrot.slane %v383, 4
    %v385 = vmax.f32 %v383, %v384
    %v386 = vrot.slane %v385, 2
    %v387 = vmax.f32 %v385, %v386
    %v388 = vrot.slane %v387, 1
    %v389 = vmax.f32 %v387, %v388
    %v390 = vsel %vm361, %v356, -inf
    %v391 = vrot.slane %v390, 4
    %v392 = vmax.f32 %v390, %v391
    %v393 = vrot.slane %v392, 2
    %v394 = vmax.f32 %v392, %v393
    %v395 = vrot.slane %v394, 1
    %v396 = vmax.f32 %v394, %v395
    %v397 = vsub.f32 %v340, %v368
    %v398 = vsub.f32 %v343, %v375
    %v399 = vsub.f32 %v348, %v382
    %v400 = vsub.f32 %v351, %v389
    %v401 = vsub.f32 %v356, %v396
    %v402 = vmul.f32 %v397, 1.442695
    %v403 = vpow.pop %v402
    %v404 = vmul.f32 %v398, 1.442695
    %v405 = vpow.pop %v404
    %v406 = vmul.f32 %v399, 1.442695
    %v407 = vpow.pop %v406
    %v408 = vmul.f32 %v400, 1.442695
    %v409 = vpow.pop %v408
    %v410 = vmul.f32 %v401, 1.442695
    %v411 = vpow.pop %v410
    %v412 = vsel %vm361, %v403, 0.0
    %v413 = vrot.slane %v412, 4
    %v414 = vadd.f32 %v412, %v413
    %v415 = vrot.slane %v414, 2
    %v416 = vadd.f32 %v414, %v415
    %v417 = vrot.slane %v416, 1
    %v418 = vadd.f32 %v416, %v417
    %v419 = vsel %vm361, %v405, 0.0
    %v420 = vrot.slane %v419, 4
    %v421 = vadd.f32 %v419, %v420
    %v422 = vrot.slane %v421, 2
    %v423 = vadd.f32 %v421, %v422
    %v424 = vrot.slane %v423, 1
    %v425 = vadd.f32 %v423, %v424
    %v426 = vsel %vm361, %v407, 0.0
    %v427 = vrot.slane %v426, 4
    %v428 = vadd.f32 %v426, %v427
    %v429 = vrot.slane %v428, 2
    %v430 = vadd.f32 %v428, %v429
    %v431 = vrot.slane %v430, 1
    %v432 = vadd.f32 %v430, %v431
    %v433 = vsel %vm361, %v409, 0.0
    %v434 = vrot.slane %v433, 4
    %v435 = vadd.f32 %v433, %v434
    %v436 = vrot.slane %v435, 2
    %v437 = vadd.f32 %v435, %v436
    %v438 = vrot.slane %v437, 1
    %v439 = vadd.f32 %v437, %v438
    %v440 = vsel %vm361, %v411, 0.0
    %v441 = vrot.slane %v440, 4
    %v442 = vadd.f32 %v440, %v441
    %v443 = vrot.slane %v442, 2
    %v444 = vadd.f32 %v442, %v443
    %v445 = vrot.slane %v444, 1
    %v446 = vadd.f32 %v444, %v445
    %v447 = vrcp.pop %v418
    %v448 = vrcp.pop %v425
    %v449 = vrcp.pop %v432
    %v450 = vrcp.pop %v439
    %v451 = vrcp.pop %v446
    %v452 = vmul.f32 %v403, %v447
    %v453 = vmul.f32 %v405, %v448
    %v454 = vmul.f32 %v407, %v449
    %v455 = vmul.f32 %v409, %v450
    %v456 = vmul.f32 %v411, %v451
    %v457 = vpack.c.bf16 %v452, %v452
    %v458 = vpack.c.bf16 %v453, %v453
    %v459 = vpack.c.bf16 %v454, %v454
    %v460 = vpack.c.bf16 %v455, %v455
    %v461 = vpack.c.bf16 %v456, %v456
    %v462 = vld [vmem:[#allocation13] sm:$0x3]
    %v468 = vunpack.c.l.b16 %v457
    %v469 = vunpack.c.l.b16 %v458
    %v470 = vunpack.c.l.b16 %v459
    %v471 = vunpack.c.l.b16 %v460
    %v472 = vunpack.c.l.b16 %v461
    %v473 = vpack.c.b16 %v469, %v468
    %v474 = vpack.c.b16 %v471, %v470
    %v475 = vpack.c.b16 %v472, %v472
    %v477 = vsel %vm361, %v473, 0
    %v480 = vsel %vm361, %v474, 0
    %v483 = vsel %vm361, %v475, 0
    %vm485 = vcmask 1041408
    %v487 = vsel %vm485, %v462, 0
    %489 = vmatprep.subr.bf16.mxu0 0
    %490 = vmatpush1.bf16.msra.mxu0 %v487
    %491 = vmatprep.subr.bf16.mxu0 0
    %492 = vmatpush1.bf16.msra.mxu0 0
    %493 = vmatprep.subr.bf16.mxu0 0
    %494 = vmatpush1.bf16.msra.mxu0 0
    %495 = vmatprep.subr.bf16.mxu0 0
    %496 = vmatpush1.bf16.msra.mxu0 0
    %497 = vmatprep.subr.bf16.mxu0 0
    %498 = vmatpush1.bf16.msra.mxu0 0
    %499 = vmatprep.subr.bf16.mxu0 0
    %500 = vmatpush1.bf16.msra.mxu0 0
    %501 = vmatprep.subr.bf16.mxu0 0
    %502 = vmatpush1.bf16.msra.mxu0 0
    %503 = vmatprep.subr.bf16.mxu0 0
    %504 = vmatpush1.bf16.msra.mxu0 0
    %505 = vmatprep.subr.bf16.mxu0 0
    %506 = vmatpush1.bf16.msra.mxu0 0
    %507 = vmatprep.subr.bf16.mxu0 0
    %508 = vmatpush1.bf16.msra.mxu0 0
    %509 = vmatprep.subr.bf16.mxu0 0
    %510 = vmatpush1.bf16.msra.mxu0 0
    %511 = vmatprep.subr.bf16.mxu0 0
    %512 = vmatpush1.bf16.msra.mxu0 0
    %513 = vmatprep.subr.bf16.mxu0 0
    %514 = vmatpush1.bf16.msra.mxu0 0
    %515 = vmatprep.subr.bf16.mxu0 0
    %516 = vmatpush1.bf16.msra.mxu0 0
    %517 = vmatprep.subr.bf16.mxu0 0
    %518 = vmatpush1.bf16.msra.mxu0 0
    %519 = vmatprep.subr.bf16.mxu0 0
    %520 = vmatpush1.bf16.msra.mxu0 0
    %521 = vmatprep.mubr.bf16.mxu0 0
    %522 = vmatmul.mubr.bf16.gmra.mrb[0].mxu0 %v477
    %v523 = vpop.f32.mrb[0].mxu0
    %v524 = vadd.f32 0.0, %v523
    %v525 = vpop.f32.mrb[0].mxu0
    %v526 = vpop.f32.mrb[0].mxu0
    %v527 = vadd.f32 0.0, %v526
    %v528 = vpop.f32.mrb[0].mxu0
    %529 = vmatprep.mubr.bf16.mxu0 0
    %530 = vmatmul.mubr.bf16.gmra.mrb[0].mxu0 %v480
    %v531 = vpop.f32.mrb[0].mxu0
    %v532 = vadd.f32 0.0, %v531
    %v533 = vpop.f32.mrb[0].mxu0
    %v534 = vpop.f32.mrb[0].mxu0
    %v535 = vadd.f32 0.0, %v534
    %v536 = vpop.f32.mrb[0].mxu0
    %537 = vmatprep.mubr.bf16.mxu0 0
    %538 = vmatmul.mubr.bf16.gmra.mrb[0].mxu0 %v483
    %v539 = vpop.f32.mrb[0].mxu0
    %v540 = vadd.f32 0.0, %v539
    %v541 = vpop.f32.mrb[0].mxu0
    %v542 = vpop.f32.mrb[0].mxu0
    %v543 = vpop.f32.mrb[0].mxu0
    %544 = vdwg.mxu0
    %v545 = vmul.f32 %v524, %v234
    %v546 = vmul.f32 %v527, %v237
    %v547 = vmul.f32 %v532, %v242
    %v548 = vmul.f32 %v535, %v245
    %v549 = vmul.f32 %v540, %v250
    %v550 = vsel %vm189, %v545, 0.0
    %v551 = vrot.slane %v550, 4
    %v552 = vadd.f32 %v550, %v551
    %v553 = vrot.slane %v552, 2
    %v554 = vadd.f32 %v552, %v553
    %v555 = vrot.slane %v554, 1
    %v556 = vadd.f32 %v554, %v555
    %v557 = vsel %vm189, %v546, 0.0
    %v558 = vrot.slane %v557, 4
    %v559 = vadd.f32 %v557, %v558
    %v560 = vrot.slane %v559, 2
    %v561 = vadd.f32 %v559, %v560
    %v562 = vrot.slane %v561, 1
    %v563 = vadd.f32 %v561, %v562
    %v564 = vsel %vm189, %v547, 0.0
    %v565 = vrot.slane %v564, 4
    %v566 = vadd.f32 %v564, %v565
    %v567 = vrot.slane %v566, 2
    %v568 = vadd.f32 %v566, %v567
    %v569 = vrot.slane %v568, 1
    %v570 = vadd.f32 %v568, %v569
    %v571 = vsel %vm189, %v548, 0.0
    %v572 = vrot.slane %v571, 4
    %v573 = vadd.f32 %v571, %v572
    %v574 = vrot.slane %v573, 2
    %v575 = vadd.f32 %v573, %v574
    %v576 = vrot.slane %v575, 1
    %v577 = vadd.f32 %v575, %v576
    %v578 = vsel %vm189, %v549, 0.0
    %v579 = vrot.slane %v578, 4
    %v580 = vadd.f32 %v578, %v579
    %v581 = vrot.slane %v580, 2
    %v582 = vadd.f32 %v580, %v581
    %v583 = vrot.slane %v582, 1
    %v584 = vadd.f32 %v582, %v583
    %v585 = vpack.c.bf16 %v556, %v556
    %v586 = vpack.c.bf16 %v563, %v563
    %v587 = vpack.c.bf16 %v570, %v570
    %v588 = vpack.c.bf16 %v577, %v577
    %v589 = vpack.c.bf16 %v584, %v584
    %v590 = vld [vmem:[#allocation14] sm:$0xf]
    %v591 = vld [vmem:[#allocation14 + $0x4] sm:$0xf]
    %v592 = vld [vmem:[#allocation14 + $0x8] sm:$0xf]
    %v593 = vld [vmem:[#allocation14 + $0xc] sm:$0xf]
    %v594 = vld [vmem:[#allocation16] sm:$0x1]
    %v596 = vlaneseq
    %v597 = vshrl.u32 %v596, 7
    %v598 = vsub.s32 0, %v597
    %v599 = vrot.slane %v594, %v598
    %v606 = vunpack.c.l.b16 %v585
    %v607 = vunpack.c.l.b16 %v586
    %v608 = vunpack.c.l.b16 %v587
    %v609 = vunpack.c.l.b16 %v588
    %v610 = vunpack.c.l.b16 %v589
    %vm611 = vcmask 1041409
    %v612 = vsel %vm611, %v607, %v606
    %vm613 = vcmask 1042434
    %v614 = vsel %vm613, %v608, %v612
    %vm615 = vcmask 1043459
    %v616 = vsel %vm615, %v609, %v614
    %vm617 = vcmask 1044484
    %v618 = vsel %vm617, %v610, %v616
    %v619 = vpack.c.b16 %v618, %v618
    %v624 = vunpack.c.l.b16 %v590
    %v625 = vunpack.c.l.b16 %v591
    %v626 = vunpack.c.l.b16 %v592
    %v627 = vunpack.c.l.b16 %v593
    %v628 = vpack.c.b16 %v625, %v624
    %v629 = vpack.c.b16 %v627, %v626
    %v633 = vsel %vm189, %v619, 0
    %635 = vmatprep.subr.bf16.mxu0 0
    %636 = vmatpush1.bf16.msra.mxu0 %v628
    %637 = vmatprep.subr.bf16.mxu0 0
    %638 = vmatpush1.bf16.msra.mxu0 %v629
    %639 = vmatprep.subr.bf16.mxu0 0
    %640 = vmatpush1.bf16.msra.mxu0 0
    %641 = vmatprep.subr.bf16.mxu0 0
    %642 = vmatpush1.bf16.msra.mxu0 0
    %643 = vmatprep.subr.bf16.mxu0 0
    %644 = vmatpush1.bf16.msra.mxu0 0
    %645 = vmatprep.subr.bf16.mxu0 0
    %646 = vmatpush1.bf16.msra.mxu0 0
    %647 = vmatprep.subr.bf16.mxu0 0
    %648 = vmatpush1.bf16.msra.mxu0 0
    %649 = vmatprep.subr.bf16.mxu0 0
    %650 = vmatpush1.bf16.msra.mxu0 0
    %651 = vmatprep.subr.bf16.mxu0 0
    %652 = vmatpush1.bf16.msra.mxu0 0
    %653 = vmatprep.subr.bf16.mxu0 0
    %654 = vmatpush1.bf16.msra.mxu0 0
    %655 = vmatprep.subr.bf16.mxu0 0
    %656 = vmatpush1.bf16.msra.mxu0 0
    %657 = vmatprep.subr.bf16.mxu0 0
    %658 = vmatpush1.bf16.msra.mxu0 0
    %659 = vmatprep.subr.bf16.mxu0 0
    %660 = vmatpush1.bf16.msra.mxu0 0
    %661 = vmatprep.subr.bf16.mxu0 0
    %662 = vmatpush1.bf16.msra.mxu0 0
    %663 = vmatprep.subr.bf16.mxu0 0
    %664 = vmatpush1.bf16.msra.mxu0 0
    %665 = vmatprep.subr.bf16.mxu0 0
    %666 = vmatpush1.bf16.msra.mxu0 0
    %667 = vmatprep.mubr.bf16.mxu0 0
    %668 = vmatmul.mubr.bf16.gmra.mrb[0].mxu0 %v633
    %v669 = vpop.f32.mrb[0].mxu0
    %v670 = vadd.f32 %v599, %v669
    %v671 = vpop.f32.mrb[0].mxu0
    %v672 = vpop.f32.mrb[0].mxu0
    %v673 = vpop.f32.mrb[0].mxu0
    %674 = vdwg.mxu0
    %vm675 = vcmask 258048
    %676 = vst.msk [vmem:[#allocation17] sm:$0x1f] %vm675, %v670
    // Predicated region
    $region74: #{tpu_custom_call.1} parent=1 // pred_check
      _
    $region75: #{tpu_custom_call.1} parent=1 // pred_check_branch
      %678 = sbr.rel (0) target = $region77
    $region76: #{tpu_custom_call.1} parent=1 // pred_region
      %s680 = ssub.s32 128, 128
      %681 = vsyncadd [#allocation4], %s680
      %s683 = sshll.u32 [#allocation17], 4
      %s684 = int_to_ptr.vmem [resolvable:$true] %s683
      %686 = dma.vmem_to_hbm [thread:$0]  %s684, 128, %s9, [#allocation4]
    $region77: #{tpu_custom_call.1} parent=1 // pred_fallthru
      _
    // Predicated region
    $region78: #{tpu_custom_call.1} parent=1 // pred_check
      _
    $region79: #{tpu_custom_call.1} parent=1 // pred_check_branch
      %688 = sbr.rel (0) target = $region81
    $region80: #{tpu_custom_call.1} parent=1 // pred_region
      %689 = dma.done [#allocation4], 128
    $region81: #{tpu_custom_call.1} parent=1 // pred_fallthru
      _
    %690 = vsyncpa [#allocation3], 1
    %691 = vsyncpa [#allocation6], 1
    %692 = vsyncpa [#allocation9], 1
    %693 = vsyncpa [#allocation12], 1
    %694 = vsyncpa [#allocation15], 1
    %695 = vsyncpa [#allocation4], 1

</llo_original>
